<compile_context>
chip_gen: v6e
topology: v6e:2x2x1
jax: 0.10.0
libtpu: 0.0.40
codegen_flags: <defaults>
</compile_context>

<pallas_src>
import jax
import jax.numpy as jnp
from jax.experimental import pallas as pl
from jax.experimental.pallas import tpu as pltpu


C_PAD = 8            # conv input channels padded 6 -> 8 (sublane-aligned K)
MAX_TILE_N = 2048    # streaming tile over the point (lane) axis
LANE = 128


def _round_up(x, m):
    return ((x + m - 1) // m) * m


# ---------------------------------------------------------------------------
# Kernel 1: streaming per-point MLP (kernel-size-1 conv chain) + running max.
# ---------------------------------------------------------------------------
def feature_kernel(x_ref, w1_ref, b1_ref, w2_ref, b2_ref, w3_ref, b3_ref,
                   feat_ref):
    """grid = (B, n_tiles); feat_ref (1, 256, 1) doubles as the accumulator."""
    n = pl.program_id(1)

    @pl.when(n == 0)
    def _init():
        feat_ref[...] = jnp.full(feat_ref.shape, -jnp.inf, feat_ref.dtype)

    # Transposed-orientation chain: bf16 MXU inputs, f32 accumulation,
    # f32 bias/ReLU on the VPU (v5e-safe: no bf16 elementwise needed).
    x = x_ref[0]                                                   # (8, T) bf16
    a = jnp.maximum(jnp.dot(w1_ref[...], x,
                            preferred_element_type=jnp.float32) + b1_ref[...],
                    0.0)                                           # (64, T)
    a = jnp.maximum(jnp.dot(w2_ref[...], a.astype(jnp.bfloat16),
                            preferred_element_type=jnp.float32) + b2_ref[...],
                    0.0)                                           # (128, T)
    a = jnp.maximum(jnp.dot(w3_ref[...], a.astype(jnp.bfloat16),
                            preferred_element_type=jnp.float32) + b3_ref[...],
                    0.0)                                           # (256, T)

    # Global max over points (== torch.max(x, dim=2)) as a lane-axis reduce.
    tile_max = jnp.max(a, axis=1, keepdims=True)                   # (256, 1)
    feat_ref[...] = jnp.maximum(feat_ref[...], tile_max[None])     # (1, 256, 1)


# ---------------------------------------------------------------------------
# Kernel 2: batched FC head 256 -> 128 -> 64 -> num_classes (one grid step).
# ---------------------------------------------------------------------------
def head_kernel(g_ref, fw1_ref, fb1_ref, fw2_ref, fb2_ref, fw3_ref, fb3_ref,
                out_ref):
    f = jnp.maximum(jnp.dot(g_ref[...], fw1_ref[...],
                            preferred_element_type=jnp.float32) + fb1_ref[...],
                    0.0)                                           # (B, 128)
    f = jnp.maximum(jnp.dot(f, fw2_ref[...],
                            preferred_element_type=jnp.float32) + fb2_ref[...],
                    0.0)                                           # (B, 64)
    out_ref[...] = jnp.dot(f, fw3_ref[...],
                           preferred_element_type=jnp.float32) + fb3_ref[...]


def _choose_tiling(n):
    """Tile the point axis: <=MAX_TILE_N per tile, multiple of 128 lanes,
    sized so replicate-padding waste stays below one lane group per tile."""
    n_tiles = max(1, -(-n // MAX_TILE_N))
    tile_n = _round_up(-(-n // n_tiles), LANE)
    return tile_n, n_tiles


def spectral_forward(x, params):
    B, N, C_in = x.shape
    num_classes = params['fw3'].shape[1]
    out_pad = _round_up(num_classes, LANE)

    tile_n, n_tiles = _choose_tiling(N)
    n_pad = tile_n * n_tiles

    # Lane-dense x: (B, C, N) with points on lanes. Channels zero-padded 6->8,
    # points edge-replicated (replicated points cannot change a post-ReLU max).
    xt = jnp.transpose(x, (0, 2, 1))
    xt = jnp.pad(xt, ((0, 0), (0, C_PAD - C_in), (0, 0)))
    if n_pad != N:
        xt = jnp.pad(xt, ((0, 0), (0, 0), (0, n_pad - N)), mode='edge')
    xt = xt.astype(jnp.bfloat16)

    # Conv weights pre-transposed to (out, in); biases as (out, 1) columns.
    w1t = jnp.pad(params['w1'], ((0, C_PAD - C_in), (0, 0))).T.astype(jnp.bfloat16)
    w2t = params['w2'].T.astype(jnp.bfloat16)
    w3t = params['w3'].T.astype(jnp.bfloat16)
    b1c = params['b1'].reshape(-1, 1)
    b2c = params['b2'].reshape(-1, 1)
    b3c = params['b3'].reshape(-1, 1)

    def full_spec(a):
        nd = a.ndim
        return pl.BlockSpec(a.shape, lambda b, n, _nd=nd: (0,) * _nd)

    feats = pl.pallas_call(
        feature_kernel,
        out_shape=jax.ShapeDtypeStruct((B, 256, 1), jnp.float32),
        grid_spec=pltpu.PrefetchScalarGridSpec(
            num_scalar_prefetch=0,
            grid=(B, n_tiles),
            in_specs=[
                pl.BlockSpec((1, C_PAD, tile_n), lambda b, n: (b, 0, n)),
                full_spec(w1t), full_spec(b1c),
                full_spec(w2t), full_spec(b2c),
                full_spec(w3t), full_spec(b3c),
            ],
            out_specs=pl.BlockSpec((1, 256, 1), lambda b, n: (b, 0, 0)),
        ),
        compiler_params=pltpu.CompilerParams(
            dimension_semantics=("parallel", "arbitrary")),
    )(xt, w1t, b1c, w2t, b2c, w3t, b3c)

    g = feats.reshape(B, 256)                     # (B, 256) pooled features

    fw3 = jnp.pad(params['fw3'], ((0, 0), (0, out_pad - num_classes)))
    fb3 = jnp.pad(params['fb3'], ((0, 0), (0, out_pad - num_classes)))

    def head_spec(a):
        nd = a.ndim
        return pl.BlockSpec(a.shape, lambda i, _nd=nd: (0,) * _nd)

    logits = pl.pallas_call(
        head_kernel,
        out_shape=jax.ShapeDtypeStruct((B, out_pad), jnp.float32),
        grid_spec=pltpu.PrefetchScalarGridSpec(
            num_scalar_prefetch=0,
            grid=(1,),
            in_specs=[head_spec(g),
                      head_spec(params['fw1']), head_spec(params['fb1']),
                      head_spec(params['fw2']), head_spec(params['fb2']),
                      head_spec(fw3), head_spec(fb3)],
            out_specs=pl.BlockSpec((B, out_pad), lambda i: (0, 0)),
        ),
        compiler_params=pltpu.CompilerParams(
            dimension_semantics=("arbitrary",)),
    )(g, params['fw1'], params['fb1'], params['fw2'], params['fb2'], fw3, fb3)

    return logits[:, :num_classes]


def init_params(key, num_classes):
    """PyTorch-style uniform fan-in init.  Weights stored as (in, out)."""
    ks = jax.random.split(key, 12)

    def u(k, shape, fan_in):
        bound = 1.0 / (fan_in ** 0.5)
        return jax.random.uniform(k, shape, jnp.float32, -bound, bound)

    p = {}
    p['w1'], p['b1'] = u(ks[0], (6, 64), 6),        u(ks[1], (1, 64), 6)
    p['w2'], p['b2'] = u(ks[2], (64, 128), 64),     u(ks[3], (1, 128), 64)
    p['w3'], p['b3'] = u(ks[4], (128, 256), 128),   u(ks[5], (1, 256), 128)
    p['fw1'], p['fb1'] = u(ks[6], (256, 128), 256), u(ks[7], (1, 128), 256)
    p['fw2'], p['fb2'] = u(ks[8], (128, 64), 128),  u(ks[9], (1, 64), 128)
    p['fw3'], p['fb3'] = (u(ks[10], (64, num_classes), 64),
                          u(ks[11], (1, num_classes), 64))
    return p


def spectral_forward_ref(x, params):
    """Pure-JAX f32 reference mirroring the PyTorch forward."""
    h = jnp.maximum(jnp.einsum('bnc,cd->bnd', x, params['w1']) + params['b1'], 0.0)
    h = jnp.maximum(jnp.einsum('bnc,cd->bnd', h, params['w2']) + params['b2'], 0.0)
    h = jnp.maximum(jnp.einsum('bnc,cd->bnd', h, params['w3']) + params['b3'], 0.0)
    g = jnp.max(h, axis=1)                               # (B, 256)
    f = jnp.maximum(g @ params['fw1'] + params['fb1'], 0.0)
    f = jnp.maximum(f @ params['fw2'] + params['fb2'], 0.0)
    return f @ params['fw3'] + params['fb3']


if __name__ == "__main__":
    key = jax.random.PRNGKey(0)
    k_x, k_p = jax.random.split(key)

    B, N, C_in = 2, 16, 6        # batch of 2 "point clouds", 16 points, 6 features
    num_classes = 10

    x = jax.random.normal(k_x, (B, N, C_in), jnp.float32)
    params = init_params(k_p, num_classes)

    out = spectral_forward(x, params)
    out = jax.block_until_ready(out)

    ref = spectral_forward_ref(x, params)
    assert out.shape == (B, num_classes)
    # bf16 matmul inputs in the conv chain -> loosened tolerance vs f32 ref.
    assert jnp.allclose(out, ref, atol=2e-2, rtol=2e-2), \
        f"max abs err {jnp.max(jnp.abs(out - ref))}"

    print("KERNEL_OK")
</pallas_src>

<mosaic_0001>
module attributes {stable_mosaic.version = 11 : i64} {
  func.func @feature_kernel(%arg0: i32, %arg1: i32, %arg2: memref<1x8x128xbf16, #tpu.memory_space<vmem>>, %arg3: memref<64x8xbf16, #tpu.memory_space<vmem>>, %arg4: memref<64x1xf32, #tpu.memory_space<vmem>>, %arg5: memref<128x64xbf16, #tpu.memory_space<vmem>>, %arg6: memref<128x1xf32, #tpu.memory_space<vmem>>, %arg7: memref<256x128xbf16, #tpu.memory_space<vmem>>, %arg8: memref<256x1xf32, #tpu.memory_space<vmem>>, %arg9: memref<1x256x1xf32, #tpu.memory_space<vmem>>) attributes {dimension_semantics = [#tpu.dimension_semantics<parallel>, #tpu.dimension_semantics<arbitrary>], iteration_bounds = array<i64: 2, 1>, scalar_prefetch = 0 : i64, scratch_operands = 0 : i64, tpu.core_type = #tpu.core_type<tc>, window_params = [{transform_indices = @transform_0, window_bounds = array<i64: 1, 8, 128>}, {pipeline_mode = #tpu.pipeline_mode<synchronous>, transform_indices = @transform_1, window_bounds = array<i64: 64, 8>}, {pipeline_mode = #tpu.pipeline_mode<synchronous>, transform_indices = @transform_2, window_bounds = array<i64: 64, 1>}, {pipeline_mode = #tpu.pipeline_mode<synchronous>, transform_indices = @transform_3, window_bounds = array<i64: 128, 64>}, {pipeline_mode = #tpu.pipeline_mode<synchronous>, transform_indices = @transform_4, window_bounds = array<i64: 128, 1>}, {pipeline_mode = #tpu.pipeline_mode<synchronous>, transform_indices = @transform_5, window_bounds = array<i64: 256, 128>}, {pipeline_mode = #tpu.pipeline_mode<synchronous>, transform_indices = @transform_6, window_bounds = array<i64: 256, 1>}, {transform_indices = @transform_7, window_bounds = array<i64: 1, 256, 1>}]} {
    %c0_i32 = arith.constant 0 : i32
    %0 = arith.cmpi eq, %arg1, %c0_i32 : i32
    %1 = arith.extui %0 : i1 to i32
    %c0_i32_0 = arith.constant 0 : i32
    %2 = arith.cmpi ne, %1, %c0_i32_0 : i32
    scf.if %2 {
      %cst_27 = arith.constant 0xFF800000 : f32
      %34 = vector.broadcast %cst_27 : f32 to vector<1x256x1xf32>
      %c0_28 = arith.constant 0 : index
      %c0_29 = arith.constant 0 : index
      %c0_30 = arith.constant 0 : index
      %35 = vector.load %arg9[%c0_28, %c0_29, %c0_30] : memref<1x256x1xf32, #tpu.memory_space<vmem>>, vector<1x256x1xf32>
      tpu.vector_store %arg9[%c0_28, %c0_29, %c0_30], %34 {strides = array<i32>} : memref<1x256x1xf32, #tpu.memory_space<vmem>>, vector<1x256x1xf32>,
    } else {
    }
    %c0 = arith.constant 0 : index
    %c0_1 = arith.constant 0 : index
    %c0_2 = arith.constant 0 : index
    %3 = vector.load %arg2[%c0, %c0_1, %c0_2] : memref<1x8x128xbf16, #tpu.memory_space<vmem>>, vector<1x8x128xbf16>
    %4 = vector.shape_cast %3 : vector<1x8x128xbf16> to vector<8x128xbf16>
    %c0_3 = arith.constant 0 : index
    %c0_4 = arith.constant 0 : index
    %5 = vector.load %arg3[%c0_3, %c0_4] : memref<64x8xbf16, #tpu.memory_space<vmem>>, vector<64x8xbf16>
    %cst = arith.constant dense<0.000000e+00> : vector<64x128xf32>
    %6 = tpu.matmul %5, %4, %cst {dimension_numbers = #tpu.dot_dimension_numbers<[1], [0], [0], [1], [0, 0, 1, 1], [], []>} : vector<64x8xbf16>, vector<8x128xbf16>, vector<64x128xf32> -> vector<64x128xf32>
    %c0_5 = arith.constant 0 : index
    %c0_6 = arith.constant 0 : index
    %7 = vector.load %arg4[%c0_5, %c0_6] : memref<64x1xf32, #tpu.memory_space<vmem>>, vector<64x1xf32>
    %8 = vector.broadcast %7 : vector<64x1xf32> to vector<64x128xf32>
    %9 = arith.addf %6, %8 : vector<64x128xf32>
    %cst_7 = arith.constant 0.000000e+00 : f32
    %10 = vector.broadcast %cst_7 : f32 to vector<64x128xf32>
    %11 = arith.maximumf %9, %10 : vector<64x128xf32>
    %c0_8 = arith.constant 0 : index
    %c0_9 = arith.constant 0 : index
    %12 = vector.load %arg5[%c0_8, %c0_9] : memref<128x64xbf16, #tpu.memory_space<vmem>>, vector<128x64xbf16>
    %13 = arith.truncf %11 : vector<64x128xf32> to vector<64x128xbf16>
    %cst_10 = arith.constant dense<0.000000e+00> : vector<128x128xf32>
    %14 = tpu.matmul %12, %13, %cst_10 {dimension_numbers = #tpu.dot_dimension_numbers<[1], [0], [0], [1], [0, 0, 1, 1], [], []>} : vector<128x64xbf16>, vector<64x128xbf16>, vector<128x128xf32> -> vector<128x128xf32>
    %c0_11 = arith.constant 0 : index
    %c0_12 = arith.constant 0 : index
    %15 = vector.load %arg6[%c0_11, %c0_12] : memref<128x1xf32, #tpu.memory_space<vmem>>, vector<128x1xf32>
    %16 = vector.broadcast %15 : vector<128x1xf32> to vector<128x128xf32>
    %17 = arith.addf %14, %16 : vector<128x128xf32>
    %cst_13 = arith.constant 0.000000e+00 : f32
    %18 = vector.broadcast %cst_13 : f32 to vector<128x128xf32>
    %19 = arith.maximumf %17, %18 : vector<128x128xf32>
    %c0_14 = arith.constant 0 : index
    %c0_15 = arith.constant 0 : index
    %20 = vector.load %arg7[%c0_14, %c0_15] : memref<256x128xbf16, #tpu.memory_space<vmem>>, vector<256x128xbf16>
    %21 = arith.truncf %19 : vector<128x128xf32> to vector<128x128xbf16>
    %cst_16 = arith.constant dense<0.000000e+00> : vector<256x128xf32>
    %22 = tpu.matmul %20, %21, %cst_16 {dimension_numbers = #tpu.dot_dimension_numbers<[1], [0], [0], [1], [0, 0, 1, 1], [], []>} : vector<256x128xbf16>, vector<128x128xbf16>, vector<256x128xf32> -> vector<256x128xf32>
    %c0_17 = arith.constant 0 : index
    %c0_18 = arith.constant 0 : index
    %23 = vector.load %arg8[%c0_17, %c0_18] : memref<256x1xf32, #tpu.memory_space<vmem>>, vector<256x1xf32>
    %24 = vector.broadcast %23 : vector<256x1xf32> to vector<256x128xf32>
    %25 = arith.addf %22, %24 : vector<256x128xf32>
    %cst_19 = arith.constant 0.000000e+00 : f32
    %26 = vector.broadcast %cst_19 : f32 to vector<256x128xf32>
    %27 = arith.maximumf %25, %26 : vector<256x128xf32>
    %cst_20 = arith.constant dense<0xFF800000> : vector<256xf32>
    %28 = vector.multi_reduction <maximumf>, %27, %cst_20 [1] : vector<256x128xf32> to vector<256xf32>
    %29 = vector.shape_cast %28 : vector<256xf32> to vector<256x1xf32>
    %c0_21 = arith.constant 0 : index
    %c0_22 = arith.constant 0 : index
    %c0_23 = arith.constant 0 : index
    %30 = vector.load %arg9[%c0_21, %c0_22, %c0_23] : memref<1x256x1xf32, #tpu.memory_space<vmem>>, vector<1x256x1xf32>
    %31 = vector.shape_cast %29 : vector<256x1xf32> to vector<1x256x1xf32>
    %32 = arith.maximumf %30, %31 : vector<1x256x1xf32>
    %c0_24 = arith.constant 0 : index
    %c0_25 = arith.constant 0 : index
    %c0_26 = arith.constant 0 : index
    %33 = vector.load %arg9[%c0_24, %c0_25, %c0_26] : memref<1x256x1xf32, #tpu.memory_space<vmem>>, vector<1x256x1xf32>
    tpu.vector_store %arg9[%c0_24, %c0_25, %c0_26], %32 {strides = array<i32>} : memref<1x256x1xf32, #tpu.memory_space<vmem>>, vector<1x256x1xf32>,
    return
  }
  func.func @transform_0(%arg0: i32, %arg1: i32) -> (i32, i32, i32) {
    %c0_i32 = arith.constant 0 : i32
    %c0_i32_0 = arith.constant 0 : i32
    return %arg0, %c0_i32, %arg1 : i32, i32, i32
  }
  func.func @transform_1(%arg0: i32, %arg1: i32) -> (i32, i32) {
    %c0_i32 = arith.constant 0 : i32
    %c0_i32_0 = arith.constant 0 : i32
    %c0_i32_1 = arith.constant 0 : i32
    return %c0_i32, %c0_i32_0 : i32, i32
  }
  func.func @transform_2(%arg0: i32, %arg1: i32) -> (i32, i32) {
    %c0_i32 = arith.constant 0 : i32
    %c0_i32_0 = arith.constant 0 : i32
    %c0_i32_1 = arith.constant 0 : i32
    return %c0_i32, %c0_i32_0 : i32, i32
  }
  func.func @transform_3(%arg0: i32, %arg1: i32) -> (i32, i32) {
    %c0_i32 = arith.constant 0 : i32
    %c0_i32_0 = arith.constant 0 : i32
    %c0_i32_1 = arith.constant 0 : i32
    return %c0_i32, %c0_i32_0 : i32, i32
  }
  func.func @transform_4(%arg0: i32, %arg1: i32) -> (i32, i32) {
    %c0_i32 = arith.constant 0 : i32
    %c0_i32_0 = arith.constant 0 : i32
    %c0_i32_1 = arith.constant 0 : i32
    return %c0_i32, %c0_i32_0 : i32, i32
  }
  func.func @transform_5(%arg0: i32, %arg1: i32) -> (i32, i32) {
    %c0_i32 = arith.constant 0 : i32
    %c0_i32_0 = arith.constant 0 : i32
    %c0_i32_1 = arith.constant 0 : i32
    return %c0_i32, %c0_i32_0 : i32, i32
  }
  func.func @transform_6(%arg0: i32, %arg1: i32) -> (i32, i32) {
    %c0_i32 = arith.constant 0 : i32
    %c0_i32_0 = arith.constant 0 : i32
    %c0_i32_1 = arith.constant 0 : i32
    return %c0_i32, %c0_i32_0 : i32, i32
  }
  func.func @transform_7(%arg0: i32, %arg1: i32) -> (i32, i32, i32) {
    %c0_i32 = arith.constant 0 : i32
    %c0_i32_0 = arith.constant 0 : i32
    %c0_i32_1 = arith.constant 0 : i32
    return %arg0, %c0_i32, %c0_i32_0 : i32, i32, i32
  }
}

</mosaic_0001>

<llo_original>
// kernel: tpu_custom_call.1
$region0: #{tpu_custom_call.1}
  #allocation0 [shape = 'u32[]', space=smem, size = 0x4, offset = 0x4, fixed_abs, tag = 'smem constant byte address 0x4 - core index']
  #allocation1 [shape = 'u32[144,128]{1,0:T(1,128)}', space=vmem, size = 0x12000, scoped, tag = 'internal scratch']
  %s0 = inlined_call_operand.vmem [shape: bf16[2,8,128], index: 0, kind: input, shape index: {}]
  %s1 = inlined_call_operand.vmem [shape: bf16[64,8], index: 1, kind: input, shape index: {}]
  %s2 = inlined_call_operand.vmem [shape: f32[64,1], index: 2, kind: input, shape index: {}]
  %s3 = inlined_call_operand.vmem [shape: bf16[128,64], index: 3, kind: input, shape index: {}]
  %s4 = inlined_call_operand.vmem [shape: f32[128,1], index: 4, kind: input, shape index: {}]
  %s5 = inlined_call_operand.vmem [shape: bf16[256,128], index: 5, kind: input, shape index: {}]
  %s6 = inlined_call_operand.vmem [shape: f32[256,1], index: 6, kind: input, shape index: {}]
  %s7 = inlined_call_operand.vmem [shape: f32[2,256,1], index: 7, kind: output, shape index: {}]
  %s8 = sld [smem:[#allocation0]]
  $region65: #{tpu_custom_call.1} parent=0
    _
  %s10 = ssub.s32 1, %s8
  %s11 = scalar_select 0, %s10, %s8
  loop: start=0, step=1, limit=4
  $region2: #{tpu_custom_call.1} parent=0 // loop_pre_header
    _
  $region3: #{tpu_custom_call.1} parent=0 // loop_header
    %s13 = sphi 0, %s17
    %p14 = scmp.ge.s32.totalorder %s13, 4
    %s20 = sphi 0, %s32
    %s21 = sphi 0, %s28
    %s22 = sphi 0, %s20
    %s23 = sphi 0, %s21
    %s24 = sphi 0, %s22
    %s25 = sphi 0, %s23
    %s37 = sphi 0, %s39
    %s40 = sphi 0, %s37
    %s41 = sphi 0, %s40
    %s57 = sphi 0, %s41
    %s61 = sphi 0, %s61
    %s63 = sphi 0, %s61
    %s64 = sphi 0, %s63
    %s78 = sphi 0, %s64
    %s82 = sphi 0, %s82
    %s84 = sphi 0, %s82
    %s85 = sphi 0, %s84
    %s99 = sphi 0, %s85
    %s103 = sphi 0, %s103
    %s105 = sphi 0, %s103
    %s106 = sphi 0, %s105
    %s120 = sphi 0, %s106
    %s124 = sphi 0, %s124
    %s126 = sphi 0, %s124
    %s127 = sphi 0, %s126
    %s141 = sphi 0, %s127
    %s145 = sphi 0, %s145
    %s147 = sphi 0, %s145
    %s148 = sphi 0, %s147
    %s162 = sphi 0, %s148
    %s166 = sphi 0, %s166
    %s168 = sphi 0, %s166
    %s169 = sphi 0, %s168
    %s183 = sphi 0, %s169
    %s189 = sphi 0, %s191
    %s192 = sphi 0, %s189
    %s193 = sphi 0, %s192
    %s209 = sphi 0, %s193
  $region4: #{tpu_custom_call.1} parent=0 // loop_header_branch
    %16 = sbr.rel (%p14) target = $region8
  $region5: #{tpu_custom_call.1} parent=0 // loop_body
    %s18 = ssub.s32 %s13, 1
    %s19 = ssub.s32 %s13, 2
    %s26 = sadd.s32 1, %s21
    %p27 = scmp.ge.s32.totalorder %s26, 1
    %s28 = scalar_select %p27, 0, %s26
    %s29 = sadd.s32 1, %s20
    %s30 = scalar_select %p27, %s29, %s20
    %p31 = scmp.ge.s32.totalorder %s30, 2
    %s32 = scalar_select %p31, 0, %s30
    %s33 = ssub.s32 %s20, %s32
    %s34 = ssub.s32 %s21, %s28
    %s35 = sor.u32 %s33, %s34
    %p36 = scmp.eq.s32.totalorder %s35, 0
    %s38 = sadd.s32 %s37, 1
    %s39 = scalar_select %p36, %s37, %s38
    %p42 = pneg %p36
    %p43 = scmp.eq.s32.totalorder %s13, 1
    %p44 = por %p42, %p43
    %p45 = scmp.ne.s32.totalorder %s37, %s40
    %p46 = scmp.eq.s32.totalorder %s13, 0
    %p47 = por %p45, %p46
    %p48 = scmp.ne.s32.totalorder %s37, %s40
    %p49 = scmp.eq.s32.totalorder %s18, 1
    %p50 = por %p48, %p49
    %p51 = scmp.ne.s32.totalorder %s40, %s41
    %p52 = scmp.eq.s32.totalorder %s18, 0
    %p53 = por %p51, %p52
    %p54 = scmp.ne.s32.totalorder %s40, %s41
    %p55 = scmp.eq.s32.totalorder %s19, 1
    %p56 = por %p54, %p55
    %p58 = scmp.ne.s32.totalorder %s41, %s57
    %p59 = scmp.eq.s32.totalorder %s19, 0
    %p60 = por %p58, %p59
    %s62 = sadd.s32 %s61, 1
    %p65 = scmp.eq.s32.totalorder %s13, 1
    %p66 = scmp.ne.s32.totalorder %s61, %s63
    %p67 = scmp.eq.s32.totalorder %s13, 0
    %p68 = por %p66, %p67
    %p69 = scmp.ne.s32.totalorder %s61, %s63
    %p70 = scmp.eq.s32.totalorder %s18, 1
    %p71 = por %p69, %p70
    %p72 = scmp.ne.s32.totalorder %s63, %s64
    %p73 = scmp.eq.s32.totalorder %s18, 0
    %p74 = por %p72, %p73
    %p75 = scmp.ne.s32.totalorder %s63, %s64
    %p76 = scmp.eq.s32.totalorder %s19, 1
    %p77 = por %p75, %p76
    %p79 = scmp.ne.s32.totalorder %s64, %s78
    %p80 = scmp.eq.s32.totalorder %s19, 0
    %p81 = por %p79, %p80
    %s83 = sadd.s32 %s82, 1
    %p86 = scmp.eq.s32.totalorder %s13, 1
    %p87 = scmp.ne.s32.totalorder %s82, %s84
    %p88 = scmp.eq.s32.totalorder %s13, 0
    %p89 = por %p87, %p88
    %p90 = scmp.ne.s32.totalorder %s82, %s84
    %p91 = scmp.eq.s32.totalorder %s18, 1
    %p92 = por %p90, %p91
    %p93 = scmp.ne.s32.totalorder %s84, %s85
    %p94 = scmp.eq.s32.totalorder %s18, 0
    %p95 = por %p93, %p94
    %p96 = scmp.ne.s32.totalorder %s84, %s85
    %p97 = scmp.eq.s32.totalorder %s19, 1
    %p98 = por %p96, %p97
    %p100 = scmp.ne.s32.totalorder %s85, %s99
    %p101 = scmp.eq.s32.totalorder %s19, 0
    %p102 = por %p100, %p101
    %s104 = sadd.s32 %s103, 1
    %p107 = scmp.eq.s32.totalorder %s13, 1
    %p108 = scmp.ne.s32.totalorder %s103, %s105
    %p109 = scmp.eq.s32.totalorder %s13, 0
    %p110 = por %p108, %p109
    %p111 = scmp.ne.s32.totalorder %s103, %s105
    %p112 = scmp.eq.s32.totalorder %s18, 1
    %p113 = por %p111, %p112
    %p114 = scmp.ne.s32.totalorder %s105, %s106
    %p115 = scmp.eq.s32.totalorder %s18, 0
    %p116 = por %p114, %p115
    %p117 = scmp.ne.s32.totalorder %s105, %s106
    %p118 = scmp.eq.s32.totalorder %s19, 1
    %p119 = por %p117, %p118
    %p121 = scmp.ne.s32.totalorder %s106, %s120
    %p122 = scmp.eq.s32.totalorder %s19, 0
    %p123 = por %p121, %p122
    %s125 = sadd.s32 %s124, 1
    %p128 = scmp.eq.s32.totalorder %s13, 1
    %p129 = scmp.ne.s32.totalorder %s124, %s126
    %p130 = scmp.eq.s32.totalorder %s13, 0
    %p131 = por %p129, %p130
    %p132 = scmp.ne.s32.totalorder %s124, %s126
    %p133 = scmp.eq.s32.totalorder %s18, 1
    %p134 = por %p132, %p133
    %p135 = scmp.ne.s32.totalorder %s126, %s127
    %p136 = scmp.eq.s32.totalorder %s18, 0
    %p137 = por %p135, %p136
    %p138 = scmp.ne.s32.totalorder %s126, %s127
    %p139 = scmp.eq.s32.totalorder %s19, 1
    %p140 = por %p138, %p139
    %p142 = scmp.ne.s32.totalorder %s127, %s141
    %p143 = scmp.eq.s32.totalorder %s19, 0
    %p144 = por %p142, %p143
    %s146 = sadd.s32 %s145, 1
    %p149 = scmp.eq.s32.totalorder %s13, 1
    %p150 = scmp.ne.s32.totalorder %s145, %s147
    %p151 = scmp.eq.s32.totalorder %s13, 0
    %p152 = por %p150, %p151
    %p153 = scmp.ne.s32.totalorder %s145, %s147
    %p154 = scmp.eq.s32.totalorder %s18, 1
    %p155 = por %p153, %p154
    %p156 = scmp.ne.s32.totalorder %s147, %s148
    %p157 = scmp.eq.s32.totalorder %s18, 0
    %p158 = por %p156, %p157
    %p159 = scmp.ne.s32.totalorder %s147, %s148
    %p160 = scmp.eq.s32.totalorder %s19, 1
    %p161 = por %p159, %p160
    %p163 = scmp.ne.s32.totalorder %s148, %s162
    %p164 = scmp.eq.s32.totalorder %s19, 0
    %p165 = por %p163, %p164
    %s167 = sadd.s32 %s166, 1
    %p170 = scmp.eq.s32.totalorder %s13, 1
    %p171 = scmp.ne.s32.totalorder %s166, %s168
    %p172 = scmp.eq.s32.totalorder %s13, 0
    %p173 = por %p171, %p172
    %p174 = scmp.ne.s32.totalorder %s166, %s168
    %p175 = scmp.eq.s32.totalorder %s18, 1
    %p176 = por %p174, %p175
    %p177 = scmp.ne.s32.totalorder %s168, %s169
    %p178 = scmp.eq.s32.totalorder %s18, 0
    %p179 = por %p177, %p178
    %p180 = scmp.ne.s32.totalorder %s168, %s169
    %p181 = scmp.eq.s32.totalorder %s19, 1
    %p182 = por %p180, %p181
    %p184 = scmp.ne.s32.totalorder %s169, %s183
    %p185 = scmp.eq.s32.totalorder %s19, 0
    %p186 = por %p184, %p185
    %s187 = ssub.s32 %s20, %s32
    %p188 = scmp.eq.s32.totalorder %s187, 0
    %s190 = sadd.s32 %s189, 1
    %s191 = scalar_select %p188, %s189, %s190
    %p194 = pneg %p188
    %p195 = scmp.eq.s32.totalorder %s13, 1
    %p196 = por %p194, %p195
    %p197 = scmp.ne.s32.totalorder %s189, %s192
    %p198 = scmp.eq.s32.totalorder %s13, 0
    %p199 = por %p197, %p198
    %p200 = scmp.ne.s32.totalorder %s189, %s192
    %p201 = scmp.eq.s32.totalorder %s18, 1
    %p202 = por %p200, %p201
    %p203 = scmp.ne.s32.totalorder %s192, %s193
    %p204 = scmp.eq.s32.totalorder %s18, 0
    %p205 = por %p203, %p204
    %p206 = scmp.ne.s32.totalorder %s192, %s193
    %p207 = scmp.eq.s32.totalorder %s19, 1
    %p208 = por %p206, %p207
    %p210 = scmp.ne.s32.totalorder %s193, %s209
    %p211 = scmp.eq.s32.totalorder %s19, 0
    %p212 = por %p210, %p211
    %p213 = scmp.le.s32.totalorder 1, %s13
    %p214 = scmp.lt.s32.totalorder %s13, 3
    %p215 = pnand %p213, %p214
    %p216 = pneg %p215
    // Predicated region
    $region9: #{tpu_custom_call.1} parent=5 // pred_check
      _
    $region10: #{tpu_custom_call.1} parent=5 // pred_check_branch
      %218 = sbr.rel (%p215) target = $region12
    $region11: #{tpu_custom_call.1} parent=5 // pred_region
      %s219 = ssub.s32 %s13, 1
      // Predicated region
      $region13: #{tpu_custom_call.1} parent=11 // pred_check
        %p220 = pneg %p74
      $region14: #{tpu_custom_call.1} parent=11 // pred_check_branch
        %222 = sbr.rel (%p220) target = $region16
      $region15: #{tpu_custom_call.1} parent=11 // pred_region
        _
      $region16: #{tpu_custom_call.1} parent=11 // pred_fallthru
        _
      // Predicated region
      $region17: #{tpu_custom_call.1} parent=11 // pred_check
        %p223 = pneg %p95
      $region18: #{tpu_custom_call.1} parent=11 // pred_check_branch
        %225 = sbr.rel (%p223) target = $region20
      $region19: #{tpu_custom_call.1} parent=11 // pred_region
        _
      $region20: #{tpu_custom_call.1} parent=11 // pred_fallthru
        _
      // Predicated region
      $region21: #{tpu_custom_call.1} parent=11 // pred_check
        %p226 = pneg %p116
      $region22: #{tpu_custom_call.1} parent=11 // pred_check_branch
        %228 = sbr.rel (%p226) target = $region24
      $region23: #{tpu_custom_call.1} parent=11 // pred_region
        _
      $region24: #{tpu_custom_call.1} parent=11 // pred_fallthru
        _
      // Predicated region
      $region25: #{tpu_custom_call.1} parent=11 // pred_check
        %p229 = pneg %p137
      $region26: #{tpu_custom_call.1} parent=11 // pred_check_branch
        %231 = sbr.rel (%p229) target = $region28
      $region27: #{tpu_custom_call.1} parent=11 // pred_region
        _
      $region28: #{tpu_custom_call.1} parent=11 // pred_fallthru
        _
      // Predicated region
      $region29: #{tpu_custom_call.1} parent=11 // pred_check
        %p232 = pneg %p158
      $region30: #{tpu_custom_call.1} parent=11 // pred_check_branch
        %234 = sbr.rel (%p232) target = $region32
      $region31: #{tpu_custom_call.1} parent=11 // pred_region
        _
      $region32: #{tpu_custom_call.1} parent=11 // pred_fallthru
        _
      // Predicated region
      $region33: #{tpu_custom_call.1} parent=11 // pred_check
        %p235 = pneg %p179
      $region34: #{tpu_custom_call.1} parent=11 // pred_check_branch
        %237 = sbr.rel (%p235) target = $region36
      $region35: #{tpu_custom_call.1} parent=11 // pred_region
        _
      $region36: #{tpu_custom_call.1} parent=11 // pred_fallthru
        _
    $region12: #{tpu_custom_call.1} parent=5 // pred_fallthru
      _
    %p238 = scmp.lt.s32.totalorder %s13, 2
    // Predicated region
    $region37: #{tpu_custom_call.1} parent=5 // pred_check
      %p239 = pneg %p238
    $region38: #{tpu_custom_call.1} parent=5 // pred_check_branch
      %241 = sbr.rel (%p239) target = $region40
    $region39: #{tpu_custom_call.1} parent=5 // pred_region
      // Predicated region
      $region41: #{tpu_custom_call.1} parent=39 // pred_check
        %p242 = pneg %p47
      $region42: #{tpu_custom_call.1} parent=39 // pred_check_branch
        %244 = sbr.rel (%p242) target = $region44
      $region43: #{tpu_custom_call.1} parent=39 // pred_region
        %p245 = scmp.lt.s32.totalorder %s20, 1
        %s246 = scalar_select %p245, %s20, 1
        %p247 = scmp.lt.s32.totalorder %s21, 0
        %s248 = scalar_select %p247, %s21, 0
        %s249 = sadd.s32 %s248, %s246
        %s250 = smul.addr %s249, 4
        %s251 = scalar_lea.vmem %s0, %s250
      $region44: #{tpu_custom_call.1} parent=39 // pred_fallthru
        _
    $region40: #{tpu_custom_call.1} parent=5 // pred_fallthru
      _
    %p252 = scmp.le.s32.totalorder 1, %s13
    %p253 = scmp.lt.s32.totalorder %s13, 3
    %p254 = pnand %p252, %p253
    %p255 = pneg %p254
    // Predicated region
    $region45: #{tpu_custom_call.1} parent=5 // pred_check
      _
    $region46: #{tpu_custom_call.1} parent=5 // pred_check_branch
      %257 = sbr.rel (%p254) target = $region48
    $region47: #{tpu_custom_call.1} parent=5 // pred_region
      %s258 = ssub.s32 %s13, 1
      %p259 = scmp.lt.s32.totalorder %s22, 1
      %s260 = scalar_select %p259, %s22, 1
      %p261 = scmp.lt.s32.totalorder %s23, 0
      %s262 = scalar_select %p261, %s23, 0
      %s263 = sadd.s32 %s262, %s260
      %s264 = smul.addr %s263, 4
      %s265 = scalar_lea.vmem %s0, %s264
      %p266 = pneg %p53
      %p267 = pneg %p50
      %p268 = pneg %p74
      %p269 = pneg %p71
      %p270 = pneg %p95
      %p271 = pneg %p92
      %p272 = pneg %p116
      %p273 = pneg %p113
      %p274 = pneg %p137
      %p275 = pneg %p134
      %p276 = pneg %p158
      %p277 = pneg %p155
      %p278 = pneg %p179
      %p279 = pneg %p176
      %p280 = pneg %p205
      %p281 = pneg %p202
      %p282 = scmp.lt.s32.totalorder %s22, 1
      %s283 = scalar_select %p282, %s22, 1
      %s284 = smul.addr %s283, 32
      %s285 = smul.addr %s284, 8
      %s286 = scalar_lea.vmem %s7, %s285
      %p287 = scmp.lt.s32.totalorder %s22, 1
      %s288 = scalar_select %p287, %s22, 1
      %p289 = scmp.lt.s32.totalorder %s23, 0
      %s290 = scalar_select %p289, %s23, 0
      %s291 = sadd.s32 %s290, %s288
      %s292 = smul.addr %s291, 4
      %s293 = scalar_lea.vmem %s0, %s292
      %p294 = scmp.lt.s32.totalorder %s22, 1
      %s295 = scalar_select %p294, %s22, 1
      %s296 = smul.addr %s295, 32
      %s297 = smul.addr %s296, 8
      %s298 = scalar_lea.vmem %s7, %s297
      %p300 = scmp.eq.s32.totalorder %s23, 0
      // Predicated region
      $region49: #{tpu_custom_call.1} parent=47 // pred_check
        %p301 = pneg %p300
      $region50: #{tpu_custom_call.1} parent=47 // pred_check_branch
        %303 = sbr.rel (%p301) target = $region52
      $region51: #{tpu_custom_call.1} parent=47 // pred_region
        %vm304 = vcmask 7168
        %305 = vst.msk [vmem:[%s298] sm:$0xff] %vm304, -inf
        %306 = vst.msk [vmem:[%s298 + $0x8] sm:$0xff] %vm304, -inf
        %307 = vst.msk [vmem:[%s298 + $0x10] sm:$0xff] %vm304, -inf
        %308 = vst.msk [vmem:[%s298 + $0x18] sm:$0xff] %vm304, -inf
        %309 = vst.msk [vmem:[%s298 + $0x20] sm:$0xff] %vm304, -inf
        %310 = vst.msk [vmem:[%s298 + $0x28] sm:$0xff] %vm304, -inf
        %311 = vst.msk [vmem:[%s298 + $0x30] sm:$0xff] %vm304, -inf
        %312 = vst.msk [vmem:[%s298 + $0x38] sm:$0xff] %vm304, -inf
        %313 = vst.msk [vmem:[%s298 + $0x40] sm:$0xff] %vm304, -inf
        %314 = vst.msk [vmem:[%s298 + $0x48] sm:$0xff] %vm304, -inf
        %315 = vst.msk [vmem:[%s298 + $0x50] sm:$0xff] %vm304, -inf
        %316 = vst.msk [vmem:[%s298 + $0x58] sm:$0xff] %vm304, -inf
        %317 = vst.msk [vmem:[%s298 + $0x60] sm:$0xff] %vm304, -inf
        %318 = vst.msk [vmem:[%s298 + $0x68] sm:$0xff] %vm304, -inf
        %319 = vst.msk [vmem:[%s298 + $0x70] sm:$0xff] %vm304, -inf
        %320 = vst.msk [vmem:[%s298 + $0x78] sm:$0xff] %vm304, -inf
        %321 = vst.msk [vmem:[%s298 + $0x80] sm:$0xff] %vm304, -inf
        %322 = vst.msk [vmem:[%s298 + $0x88] sm:$0xff] %vm304, -inf
        %323 = vst.msk [vmem:[%s298 + $0x90] sm:$0xff] %vm304, -inf
        %324 = vst.msk [vmem:[%s298 + $0x98] sm:$0xff] %vm304, -inf
        %325 = vst.msk [vmem:[%s298 + $0xa0] sm:$0xff] %vm304, -inf
        %326 = vst.msk [vmem:[%s298 + $0xa8] sm:$0xff] %vm304, -inf
        %327 = vst.msk [vmem:[%s298 + $0xb0] sm:$0xff] %vm304, -inf
        %328 = vst.msk [vmem:[%s298 + $0xb8] sm:$0xff] %vm304, -inf
        %329 = vst.msk [vmem:[%s298 + $0xc0] sm:$0xff] %vm304, -inf
        %330 = vst.msk [vmem:[%s298 + $0xc8] sm:$0xff] %vm304, -inf
        %331 = vst.msk [vmem:[%s298 + $0xd0] sm:$0xff] %vm304, -inf
        %332 = vst.msk [vmem:[%s298 + $0xd8] sm:$0xff] %vm304, -inf
        %333 = vst.msk [vmem:[%s298 + $0xe0] sm:$0xff] %vm304, -inf
        %334 = vst.msk [vmem:[%s298 + $0xe8] sm:$0xff] %vm304, -inf
        %335 = vst.msk [vmem:[%s298 + $0xf0] sm:$0xff] %vm304, -inf
        %336 = vst.msk [vmem:[%s298 + $0xf8] sm:$0xff] %vm304, -inf
      $region52: #{tpu_custom_call.1} parent=47 // pred_fallthru
        _
      %v337 = vld [vmem:[%s293] sm:$0xf]
      %v338 = vld [vmem:[%s1] sm:$0xf]
      %v339 = vld [vmem:[%s1 + $0x4] sm:$0xf]
      %v340 = vld [vmem:[%s1 + $0x8] sm:$0xf]
      %v341 = vld [vmem:[%s1 + $0xc] sm:$0xf]
      %v342 = vld [vmem:[%s1 + $0x10] sm:$0xf]
      %v343 = vld [vmem:[%s1 + $0x14] sm:$0xf]
      %v344 = vld [vmem:[%s1 + $0x18] sm:$0xf]
      %v345 = vld [vmem:[%s1 + $0x1c] sm:$0xf]
      %v346 = vld [vmem:[%s2] sm:$0xff]
      %v347 = vld [vmem:[%s2 + $0x8] sm:$0xff]
      %v348 = vld [vmem:[%s2 + $0x10] sm:$0xff]
      %v349 = vld [vmem:[%s2 + $0x18] sm:$0xff]
      %v350 = vld [vmem:[%s2 + $0x20] sm:$0xff]
      %v351 = vld [vmem:[%s2 + $0x28] sm:$0xff]
      %v352 = vld [vmem:[%s2 + $0x30] sm:$0xff]
      %v353 = vld [vmem:[%s2 + $0x38] sm:$0xff]
      %355 = vset.pattern.permute.xlu0 0
      %356 = vperm.xlu0 %355, %v346
      %v357 = vpop.permute.xlu0 %356
      %360 = vset.pattern.permute.xlu0 0
      %361 = vperm.xlu0 %360, %v347
      %v362 = vpop.permute.xlu0 %361
      %365 = vset.pattern.permute.xlu0 0
      %366 = vperm.xlu0 %365, %v348
      %v367 = vpop.permute.xlu0 %366
      %370 = vset.pattern.permute.xlu0 0
      %371 = vperm.xlu0 %370, %v349
      %v372 = vpop.permute.xlu0 %371
      %375 = vset.pattern.permute.xlu0 0
      %376 = vperm.xlu0 %375, %v350
      %v377 = vpop.permute.xlu0 %376
      %380 = vset.pattern.permute.xlu0 0
      %381 = vperm.xlu0 %380, %v351
      %v382 = vpop.permute.xlu0 %381
      %385 = vset.pattern.permute.xlu0 0
      %386 = vperm.xlu0 %385, %v352
      %v387 = vpop.permute.xlu0 %386
      %390 = vset.pattern.permute.xlu0 0
      %391 = vperm.xlu0 %390, %v353
      %v392 = vpop.permute.xlu0 %391
      %v402 = vunpack.c.l.b16 %v338
      %v403 = vunpack.c.l.b16 %v339
      %v404 = vunpack.c.l.b16 %v340
      %v405 = vunpack.c.l.b16 %v341
      %v406 = vunpack.c.l.b16 %v342
      %v407 = vunpack.c.l.b16 %v343
      %v408 = vunpack.c.l.b16 %v344
      %v409 = vunpack.c.l.b16 %v345
      %v410 = vpack.c.b16 %v403, %v402
      %v411 = vpack.c.b16 %v405, %v404
      %v412 = vpack.c.b16 %v407, %v406
      %v413 = vpack.c.b16 %v409, %v408
      %vm414 = vcmask 64512
      %v416 = vsel %vm414, %v410, 0
      %v419 = vsel %vm414, %v411, 0
      %v422 = vsel %vm414, %v412, 0
      %v425 = vsel %vm414, %v413, 0
      %vm427 = vcmask 1043456
      %v429 = vsel %vm427, %v337, 0
      %431 = vmatprep.subr.bf16.mxu0 0
      %432 = vmatpush1.bf16.msra.mxu0 0
      %433 = vmatprep.subr.bf16.mxu0 0
      %434 = vmatpush1.bf16.msra.mxu0 0
      %435 = vmatprep.subr.bf16.mxu0 0
      %436 = vmatpush1.bf16.msra.mxu0 0
      %437 = vmatprep.subr.bf16.mxu0 0
      %438 = vmatpush1.bf16.msra.mxu0 0
      %439 = vmatprep.subr.bf16.mxu0 0
      %440 = vmatpush1.bf16.msra.mxu0 0
      %441 = vmatprep.subr.bf16.mxu0 0
      %442 = vmatpush1.bf16.msra.mxu0 0
      %443 = vmatprep.subr.bf16.mxu0 0
      %444 = vmatpush1.bf16.msra.mxu0 0
      %445 = vmatprep.subr.bf16.mxu0 0
      %446 = vmatpush1.bf16.msra.mxu0 %v429
      %447 = vmatprep.subr.bf16.mxu0 0
      %448 = vmatpush2.bf16.msra.mxu0 0
      %449 = vmatprep.subr.bf16.mxu0 0
      %450 = vmatpush2.bf16.msra.mxu0 0
      %451 = vmatprep.subr.bf16.mxu0 0
      %452 = vmatpush2.bf16.msra.mxu0 0
      %453 = vmatprep.subr.bf16.mxu0 0
      %454 = vmatpush2.bf16.msra.mxu0 0
      %455 = vmatprep.subr.bf16.mxu0 0
      %456 = vmatpush2.bf16.msra.mxu0 0
      %457 = vmatprep.subr.bf16.mxu0 0
      %458 = vmatpush2.bf16.msra.mxu0 0
      %459 = vmatprep.subr.bf16.mxu0 0
      %460 = vmatpush2.bf16.msra.mxu0 0
      %461 = vmatprep.subr.bf16.mxu0 0
      %462 = vmatpush2.bf16.msra.mxu0 0
      %463 = vmatprep.mubr.bf16.mxu0 0
      %464 = vmatmul.mubr.bf16.gmra.mxu0 %v416
      %v465 = vpop.f32.mrf.mxu0
      %v466 = vadd.f32 %v357, %v465
      %v467 = vpop.f32.mrf.mxu0
      %v468 = vpop.f32.mrf.mxu0
      %v469 = vadd.f32 %v362, %v468
      %v470 = vpop.f32.mrf.mxu0
      %471 = vmatprep.mubr.bf16.mxu0 0
      %472 = vmatmul.mubr.bf16.gmra.mxu0 %v419
      %v473 = vpop.f32.mrf.mxu0
      %v474 = vadd.f32 %v367, %v473
      %v475 = vpop.f32.mrf.mxu0
      %v476 = vpop.f32.mrf.mxu0
      %v477 = vadd.f32 %v372, %v476
      %v478 = vpop.f32.mrf.mxu0
      %479 = vmatprep.mubr.bf16.mxu0 0
      %480 = vmatmul.mubr.bf16.gmra.mxu0 %v422
      %v481 = vpop.f32.mrf.mxu0
      %v482 = vadd.f32 %v377, %v481
      %v483 = vpop.f32.mrf.mxu0
      %v484 = vpop.f32.mrf.mxu0
      %v485 = vadd.f32 %v382, %v484
      %v486 = vpop.f32.mrf.mxu0
      %487 = vmatprep.mubr.bf16.mxu0 0
      %488 = vmatmul.mubr.bf16.gmra.mxu0 %v425
      %v489 = vpop.f32.mrf.mxu0
      %v490 = vadd.f32 %v387, %v489
      %v491 = vpop.f32.mrf.mxu0
      %v492 = vpop.f32.mrf.mxu0
      %v493 = vadd.f32 %v392, %v492
      %v494 = vpop.f32.mrf.mxu0
      %495 = vdwg.mxu0
      %v496 = vmax.f32 %v466, 0.0
      %v497 = vmax.f32 %v469, 0.0
      %v498 = vmax.f32 %v474, 0.0
      %v499 = vmax.f32 %v477, 0.0
      %v500 = vmax.f32 %v482, 0.0
      %v501 = vmax.f32 %v485, 0.0
      %v502 = vmax.f32 %v490, 0.0
      %v503 = vmax.f32 %v493, 0.0
      %v504 = vld [vmem:[%s3] sm:$0xf]
      %v505 = vld [vmem:[%s3 + $0x4] sm:$0xf]
      %v506 = vld [vmem:[%s3 + $0x8] sm:$0xf]
      %v507 = vld [vmem:[%s3 + $0xc] sm:$0xf]
      %v508 = vld [vmem:[%s3 + $0x10] sm:$0xf]
      %v509 = vld [vmem:[%s3 + $0x14] sm:$0xf]
      %v510 = vld [vmem:[%s3 + $0x18] sm:$0xf]
      %v511 = vld [vmem:[%s3 + $0x1c] sm:$0xf]
      %v512 = vld [vmem:[%s3 + $0x20] sm:$0xf]
      %v513 = vld [vmem:[%s3 + $0x24] sm:$0xf]
      %v514 = vld [vmem:[%s3 + $0x28] sm:$0xf]
      %v515 = vld [vmem:[%s3 + $0x2c] sm:$0xf]
      %v516 = vld [vmem:[%s3 + $0x30] sm:$0xf]
      %v517 = vld [vmem:[%s3 + $0x34] sm:$0xf]
      %v518 = vld [vmem:[%s3 + $0x38] sm:$0xf]
      %v519 = vld [vmem:[%s3 + $0x3c] sm:$0xf]
      %v520 = vpack.c.bf16 %v497, %v496
      %v521 = vpack.c.bf16 %v499, %v498
      %v522 = vpack.c.bf16 %v501, %v500
      %v523 = vpack.c.bf16 %v503, %v502
      %v524 = vld [vmem:[%s4] sm:$0xff]
      %v525 = vld [vmem:[%s4 + $0x8] sm:$0xff]
      %v526 = vld [vmem:[%s4 + $0x10] sm:$0xff]
      %v527 = vld [vmem:[%s4 + $0x18] sm:$0xff]
      %v528 = vld [vmem:[%s4 + $0x20] sm:$0xff]
      %v529 = vld [vmem:[%s4 + $0x28] sm:$0xff]
      %v530 = vld [vmem:[%s4 + $0x30] sm:$0xff]
      %v531 = vld [vmem:[%s4 + $0x38] sm:$0xff]
      %v532 = vld [vmem:[%s4 + $0x40] sm:$0xff]
      %v533 = vld [vmem:[%s4 + $0x48] sm:$0xff]
      %v534 = vld [vmem:[%s4 + $0x50] sm:$0xff]
      %v535 = vld [vmem:[%s4 + $0x58] sm:$0xff]
      %v536 = vld [vmem:[%s4 + $0x60] sm:$0xff]
      %v537 = vld [vmem:[%s4 + $0x68] sm:$0xff]
      %v538 = vld [vmem:[%s4 + $0x70] sm:$0xff]
      %v539 = vld [vmem:[%s4 + $0x78] sm:$0xff]
      %541 = vset.pattern.permute.xlu0 0
      %542 = vperm.xlu0 %541, %v524
      %v543 = vpop.permute.xlu0 %542
      %546 = vset.pattern.permute.xlu0 0
      %547 = vperm.xlu0 %546, %v525
      %v548 = vpop.permute.xlu0 %547
      %551 = vset.pattern.permute.xlu0 0
      %552 = vperm.xlu0 %551, %v526
      %v553 = vpop.permute.xlu0 %552
      %556 = vset.pattern.permute.xlu0 0
      %557 = vperm.xlu0 %556, %v527
      %v558 = vpop.permute.xlu0 %557
      %561 = vset.pattern.permute.xlu0 0
      %562 = vperm.xlu0 %561, %v528
      %v563 = vpop.permute.xlu0 %562
      %566 = vset.pattern.permute.xlu0 0
      %567 = vperm.xlu0 %566, %v529
      %v568 = vpop.permute.xlu0 %567
      %571 = vset.pattern.permute.xlu0 0
      %572 = vperm.xlu0 %571, %v530
      %v573 = vpop.permute.xlu0 %572
      %576 = vset.pattern.permute.xlu0 0
      %577 = vperm.xlu0 %576, %v531
      %v578 = vpop.permute.xlu0 %577
      %581 = vset.pattern.permute.xlu0 0
      %582 = vperm.xlu0 %581, %v532
      %v583 = vpop.permute.xlu0 %582
      %586 = vset.pattern.permute.xlu0 0
      %587 = vperm.xlu0 %586, %v533
      %v588 = vpop.permute.xlu0 %587
      %591 = vset.pattern.permute.xlu0 0
      %592 = vperm.xlu0 %591, %v534
      %v593 = vpop.permute.xlu0 %592
      %596 = vset.pattern.permute.xlu0 0
      %597 = vperm.xlu0 %596, %v535
      %v598 = vpop.permute.xlu0 %597
      %601 = vset.pattern.permute.xlu0 0
      %602 = vperm.xlu0 %601, %v536
      %v603 = vpop.permute.xlu0 %602
      %606 = vset.pattern.permute.xlu0 0
      %607 = vperm.xlu0 %606, %v537
      %v608 = vpop.permute.xlu0 %607
      %611 = vset.pattern.permute.xlu0 0
      %612 = vperm.xlu0 %611, %v538
      %v613 = vpop.permute.xlu0 %612
      %616 = vset.pattern.permute.xlu0 0
      %617 = vperm.xlu0 %616, %v539
      %v618 = vpop.permute.xlu0 %617
      %v636 = vunpack.c.l.b16 %v504
      %v637 = vunpack.c.l.b16 %v505
      %v638 = vunpack.c.l.b16 %v506
      %v639 = vunpack.c.l.b16 %v507
      %v640 = vunpack.c.l.b16 %v508
      %v641 = vunpack.c.l.b16 %v509
      %v642 = vunpack.c.l.b16 %v510
      %v643 = vunpack.c.l.b16 %v511
      %v644 = vunpack.c.l.b16 %v512
      %v645 = vunpack.c.l.b16 %v513
      %v646 = vunpack.c.l.b16 %v514
      %v647 = vunpack.c.l.b16 %v515
      %v648 = vunpack.c.l.b16 %v516
      %v649 = vunpack.c.l.b16 %v517
      %v650 = vunpack.c.l.b16 %v518
      %v651 = vunpack.c.l.b16 %v519
      %v652 = vpack.c.b16 %v637, %v636
      %v653 = vpack.c.b16 %v639, %v638
      %v654 = vpack.c.b16 %v641, %v640
      %v655 = vpack.c.b16 %v643, %v642
      %v656 = vpack.c.b16 %v645, %v644
      %v657 = vpack.c.b16 %v647, %v646
      %v658 = vpack.c.b16 %v649, %v648
      %v659 = vpack.c.b16 %v651, %v650
      %vm660 = vcmask 523264
      %v662 = vsel %vm660, %v652, 0
      %v665 = vsel %vm660, %v653, 0
      %v668 = vsel %vm660, %v654, 0
      %v671 = vsel %vm660, %v655, 0
      %v674 = vsel %vm660, %v656, 0
      %v677 = vsel %vm660, %v657, 0
      %v680 = vsel %vm660, %v658, 0
      %v683 = vsel %vm660, %v659, 0
      %685 = vmatprep.subr.bf16.mxu0 0
      %686 = vmatpush1.bf16.msra.mxu0 0
      %687 = vmatprep.subr.bf16.mxu0 0
      %688 = vmatpush1.bf16.msra.mxu0 0
      %689 = vmatprep.subr.bf16.mxu0 0
      %690 = vmatpush1.bf16.msra.mxu0 0
      %691 = vmatprep.subr.bf16.mxu0 0
      %692 = vmatpush1.bf16.msra.mxu0 0
      %693 = vmatprep.subr.bf16.mxu0 0
      %694 = vmatpush1.bf16.msra.mxu0 %v523
      %695 = vmatprep.subr.bf16.mxu0 0
      %696 = vmatpush1.bf16.msra.mxu0 %v522
      %697 = vmatprep.subr.bf16.mxu0 0
      %698 = vmatpush1.bf16.msra.mxu0 %v521
      %699 = vmatprep.subr.bf16.mxu0 0
      %700 = vmatpush1.bf16.msra.mxu0 %v520
      %701 = vmatprep.subr.bf16.mxu0 0
      %702 = vmatpush2.bf16.msra.mxu0 0
      %703 = vmatprep.subr.bf16.mxu0 0
      %704 = vmatpush2.bf16.msra.mxu0 0
      %705 = vmatprep.subr.bf16.mxu0 0
      %706 = vmatpush2.bf16.msra.mxu0 0
      %707 = vmatprep.subr.bf16.mxu0 0
      %708 = vmatpush2.bf16.msra.mxu0 0
      %709 = vmatprep.subr.bf16.mxu0 0
      %710 = vmatpush2.bf16.msra.mxu0 0
      %711 = vmatprep.subr.bf16.mxu0 0
      %712 = vmatpush2.bf16.msra.mxu0 0
      %713 = vmatprep.subr.bf16.mxu0 0
      %714 = vmatpush2.bf16.msra.mxu0 0
      %715 = vmatprep.subr.bf16.mxu0 0
      %716 = vmatpush2.bf16.msra.mxu0 0
      %717 = vmatprep.mubr.bf16.mxu0 0
      %718 = vmatmul.mubr.bf16.gmra.mxu0 %v662
      %v719 = vpop.f32.mrf.mxu0
      %v720 = vadd.f32 %v543, %v719
      %v721 = vpop.f32.mrf.mxu0
      %v722 = vpop.f32.mrf.mxu0
      %v723 = vadd.f32 %v548, %v722
      %v724 = vpop.f32.mrf.mxu0
      %725 = vmatprep.mubr.bf16.mxu0 0
      %726 = vmatmul.mubr.bf16.gmra.mxu0 %v665
      %v727 = vpop.f32.mrf.mxu0
      %v728 = vadd.f32 %v553, %v727
      %v729 = vpop.f32.mrf.mxu0
      %v730 = vpop.f32.mrf.mxu0
      %v731 = vadd.f32 %v558, %v730
      %v732 = vpop.f32.mrf.mxu0
      %733 = vmatprep.mubr.bf16.mxu0 0
      %734 = vmatmul.mubr.bf16.gmra.mxu0 %v668
      %v735 = vpop.f32.mrf.mxu0
      %v736 = vadd.f32 %v563, %v735
      %v737 = vpop.f32.mrf.mxu0
      %v738 = vpop.f32.mrf.mxu0
      %v739 = vadd.f32 %v568, %v738
      %v740 = vpop.f32.mrf.mxu0
      %741 = vmatprep.mubr.bf16.mxu0 0
      %742 = vmatmul.mubr.bf16.gmra.mxu0 %v671
      %v743 = vpop.f32.mrf.mxu0
      %v744 = vadd.f32 %v573, %v743
      %v745 = vpop.f32.mrf.mxu0
      %v746 = vpop.f32.mrf.mxu0
      %v747 = vadd.f32 %v578, %v746
      %v748 = vpop.f32.mrf.mxu0
      %749 = vmatprep.mubr.bf16.mxu0 0
      %750 = vmatmul.mubr.bf16.gmra.mxu0 %v674
      %v751 = vpop.f32.mrf.mxu0
      %v752 = vadd.f32 %v583, %v751
      %v753 = vpop.f32.mrf.mxu0
      %v754 = vpop.f32.mrf.mxu0
      %v755 = vadd.f32 %v588, %v754
      %v756 = vpop.f32.mrf.mxu0
      %757 = vmatprep.mubr.bf16.mxu0 0
      %758 = vmatmul.mubr.bf16.gmra.mxu0 %v677
      %v759 = vpop.f32.mrf.mxu0
      %v760 = vadd.f32 %v593, %v759
      %v761 = vpop.f32.mrf.mxu0
      %v762 = vpop.f32.mrf.mxu0
      %v763 = vadd.f32 %v598, %v762
      %v764 = vpop.f32.mrf.mxu0
      %765 = vmatprep.mubr.bf16.mxu0 0
      %766 = vmatmul.mubr.bf16.gmra.mxu0 %v680
      %v767 = vpop.f32.mrf.mxu0
      %v768 = vadd.f32 %v603, %v767
      %v769 = vpop.f32.mrf.mxu0
      %v770 = vpop.f32.mrf.mxu0
      %v771 = vadd.f32 %v608, %v770
      %v772 = vpop.f32.mrf.mxu0
      %773 = vmatprep.mubr.bf16.mxu0 0
      %774 = vmatmul.mubr.bf16.gmra.mxu0 %v683
      %v775 = vpop.f32.mrf.mxu0
      %v776 = vadd.f32 %v613, %v775
      %v777 = vpop.f32.mrf.mxu0
      %v778 = vpop.f32.mrf.mxu0
      %v779 = vadd.f32 %v618, %v778
      %v780 = vpop.f32.mrf.mxu0
      %781 = vdwg.mxu0
      %v782 = vmax.f32 %v720, 0.0
      %v783 = vmax.f32 %v723, 0.0
      %v784 = vmax.f32 %v728, 0.0
      %v785 = vmax.f32 %v731, 0.0
      %v786 = vmax.f32 %v736, 0.0
      %v787 = vmax.f32 %v739, 0.0
      %v788 = vmax.f32 %v744, 0.0
      %v789 = vmax.f32 %v747, 0.0
      %v790 = vmax.f32 %v752, 0.0
      %v791 = vmax.f32 %v755, 0.0
      %v792 = vmax.f32 %v760, 0.0
      %v793 = vmax.f32 %v763, 0.0
      %v794 = vmax.f32 %v768, 0.0
      %v795 = vmax.f32 %v771, 0.0
      %v796 = vmax.f32 %v776, 0.0
      %v797 = vmax.f32 %v779, 0.0
      %v798 = vld [vmem:[%s5] sm:$0xf]
      %v799 = vld [vmem:[%s5 + $0x4] sm:$0xf]
      %v800 = vld [vmem:[%s5 + $0x8] sm:$0xf]
      %v801 = vld [vmem:[%s5 + $0xc] sm:$0xf]
      %v802 = vld [vmem:[%s5 + $0x10] sm:$0xf]
      %v803 = vld [vmem:[%s5 + $0x14] sm:$0xf]
      %v804 = vld [vmem:[%s5 + $0x18] sm:$0xf]
      %v805 = vld [vmem:[%s5 + $0x1c] sm:$0xf]
      %v806 = vld [vmem:[%s5 + $0x20] sm:$0xf]
      %v807 = vld [vmem:[%s5 + $0x24] sm:$0xf]
      %v808 = vld [vmem:[%s5 + $0x28] sm:$0xf]
      %v809 = vld [vmem:[%s5 + $0x2c] sm:$0xf]
      %v810 = vld [vmem:[%s5 + $0x30] sm:$0xf]
      %v811 = vld [vmem:[%s5 + $0x34] sm:$0xf]
      %v812 = vld [vmem:[%s5 + $0x38] sm:$0xf]
      %v813 = vld [vmem:[%s5 + $0x3c] sm:$0xf]
      %v814 = vld [vmem:[%s5 + $0x40] sm:$0xf]
      %v815 = vld [vmem:[%s5 + $0x44] sm:$0xf]
      %v816 = vld [vmem:[%s5 + $0x48] sm:$0xf]
      %v817 = vld [vmem:[%s5 + $0x4c] sm:$0xf]
      %v818 = vld [vmem:[%s5 + $0x50] sm:$0xf]
      %v819 = vld [vmem:[%s5 + $0x54] sm:$0xf]
      %v820 = vld [vmem:[%s5 + $0x58] sm:$0xf]
      %v821 = vld [vmem:[%s5 + $0x5c] sm:$0xf]
      %v822 = vld [vmem:[%s5 + $0x60] sm:$0xf]
      %v823 = vld [vmem:[%s5 + $0x64] sm:$0xf]
      %v824 = vld [vmem:[%s5 + $0x68] sm:$0xf]
      %v825 = vld [vmem:[%s5 + $0x6c] sm:$0xf]
      %v826 = vld [vmem:[%s5 + $0x70] sm:$0xf]
      %v827 = vld [vmem:[%s5 + $0x74] sm:$0xf]
      %v828 = vld [vmem:[%s5 + $0x78] sm:$0xf]
      %v829 = vld [vmem:[%s5 + $0x7c] sm:$0xf]
      %v830 = vpack.c.bf16 %v783, %v782
      %v831 = vpack.c.bf16 %v785, %v784
      %v832 = vpack.c.bf16 %v787, %v786
      %v833 = vpack.c.bf16 %v789, %v788
      %v834 = vpack.c.bf16 %v791, %v790
      %v835 = vpack.c.bf16 %v793, %v792
      %v836 = vpack.c.bf16 %v795, %v794
      %v837 = vpack.c.bf16 %v797, %v796
      %v838 = vld [vmem:[%s6] sm:$0xff]
      %v839 = vld [vmem:[%s6 + $0x8] sm:$0xff]
      %v840 = vld [vmem:[%s6 + $0x10] sm:$0xff]
      %v841 = vld [vmem:[%s6 + $0x18] sm:$0xff]
      %v842 = vld [vmem:[%s6 + $0x20] sm:$0xff]
      %v843 = vld [vmem:[%s6 + $0x28] sm:$0xff]
      %v844 = vld [vmem:[%s6 + $0x30] sm:$0xff]
      %v845 = vld [vmem:[%s6 + $0x38] sm:$0xff]
      %v846 = vld [vmem:[%s6 + $0x40] sm:$0xff]
      %v847 = vld [vmem:[%s6 + $0x48] sm:$0xff]
      %v848 = vld [vmem:[%s6 + $0x50] sm:$0xff]
      %v849 = vld [vmem:[%s6 + $0x58] sm:$0xff]
      %v850 = vld [vmem:[%s6 + $0x60] sm:$0xff]
      %v851 = vld [vmem:[%s6 + $0x68] sm:$0xff]
      %v852 = vld [vmem:[%s6 + $0x70] sm:$0xff]
      %v853 = vld [vmem:[%s6 + $0x78] sm:$0xff]
      %v854 = vld [vmem:[%s6 + $0x80] sm:$0xff]
      %v855 = vld [vmem:[%s6 + $0x88] sm:$0xff]
      %v856 = vld [vmem:[%s6 + $0x90] sm:$0xff]
      %v857 = vld [vmem:[%s6 + $0x98] sm:$0xff]
      %v858 = vld [vmem:[%s6 + $0xa0] sm:$0xff]
      %v859 = vld [vmem:[%s6 + $0xa8] sm:$0xff]
      %v860 = vld [vmem:[%s6 + $0xb0] sm:$0xff]
      %v861 = vld [vmem:[%s6 + $0xb8] sm:$0xff]
      %v862 = vld [vmem:[%s6 + $0xc0] sm:$0xff]
      %v863 = vld [vmem:[%s6 + $0xc8] sm:$0xff]
      %v864 = vld [vmem:[%s6 + $0xd0] sm:$0xff]
      %v865 = vld [vmem:[%s6 + $0xd8] sm:$0xff]
      %v866 = vld [vmem:[%s6 + $0xe0] sm:$0xff]
      %v867 = vld [vmem:[%s6 + $0xe8] sm:$0xff]
      %v868 = vld [vmem:[%s6 + $0xf0] sm:$0xff]
      %v869 = vld [vmem:[%s6 + $0xf8] sm:$0xff]
      %871 = vset.pattern.permute.xlu0 0
      %872 = vperm.xlu0 %871, %v838
      %v873 = vpop.permute.xlu0 %872
      %876 = vset.pattern.permute.xlu0 0
      %877 = vperm.xlu0 %876, %v839
      %v878 = vpop.permute.xlu0 %877
      %881 = vset.pattern.permute.xlu0 0
      %882 = vperm.xlu0 %881, %v840
      %v883 = vpop.permute.xlu0 %882
      %886 = vset.pattern.permute.xlu0 0
      %887 = vperm.xlu0 %886, %v841
      %v888 = vpop.permute.xlu0 %887
      %891 = vset.pattern.permute.xlu0 0
      %892 = vperm.xlu0 %891, %v842
      %v893 = vpop.permute.xlu0 %892
      %896 = vset.pattern.permute.xlu0 0
      %897 = vperm.xlu0 %896, %v843
      %v898 = vpop.permute.xlu0 %897
      %901 = vset.pattern.permute.xlu0 0
      %902 = vperm.xlu0 %901, %v844
      %v903 = vpop.permute.xlu0 %902
      %906 = vset.pattern.permute.xlu0 0
      %907 = vperm.xlu0 %906, %v845
      %v908 = vpop.permute.xlu0 %907
      %911 = vset.pattern.permute.xlu0 0
      %912 = vperm.xlu0 %911, %v846
      %v913 = vpop.permute.xlu0 %912
      %916 = vset.pattern.permute.xlu0 0
      %917 = vperm.xlu0 %916, %v847
      %v918 = vpop.permute.xlu0 %917
      %921 = vset.pattern.permute.xlu0 0
      %922 = vperm.xlu0 %921, %v848
      %v923 = vpop.permute.xlu0 %922
      %926 = vset.pattern.permute.xlu0 0
      %927 = vperm.xlu0 %926, %v849
      %v928 = vpop.permute.xlu0 %927
      %931 = vset.pattern.permute.xlu0 0
      %932 = vperm.xlu0 %931, %v850
      %v933 = vpop.permute.xlu0 %932
      %936 = vset.pattern.permute.xlu0 0
      %937 = vperm.xlu0 %936, %v851
      %v938 = vpop.permute.xlu0 %937
      %941 = vset.pattern.permute.xlu0 0
      %942 = vperm.xlu0 %941, %v852
      %v943 = vpop.permute.xlu0 %942
      %946 = vset.pattern.permute.xlu0 0
      %947 = vperm.xlu0 %946, %v853
      %v948 = vpop.permute.xlu0 %947
      %951 = vset.pattern.permute.xlu0 0
      %952 = vperm.xlu0 %951, %v854
      %v953 = vpop.permute.xlu0 %952
      %956 = vset.pattern.permute.xlu0 0
      %957 = vperm.xlu0 %956, %v855
      %v958 = vpop.permute.xlu0 %957
      %961 = vset.pattern.permute.xlu0 0
      %962 = vperm.xlu0 %961, %v856
      %v963 = vpop.permute.xlu0 %962
      %966 = vset.pattern.permute.xlu0 0
      %967 = vperm.xlu0 %966, %v857
      %v968 = vpop.permute.xlu0 %967
      %971 = vset.pattern.permute.xlu0 0
      %972 = vperm.xlu0 %971, %v858
      %v973 = vpop.permute.xlu0 %972
      %976 = vset.pattern.permute.xlu0 0
      %977 = vperm.xlu0 %976, %v859
      %v978 = vpop.permute.xlu0 %977
      %981 = vset.pattern.permute.xlu0 0
      %982 = vperm.xlu0 %981, %v860
      %v983 = vpop.permute.xlu0 %982
      %986 = vset.pattern.permute.xlu0 0
      %987 = vperm.xlu0 %986, %v861
      %v988 = vpop.permute.xlu0 %987
      %991 = vset.pattern.permute.xlu0 0
      %992 = vperm.xlu0 %991, %v862
      %v993 = vpop.permute.xlu0 %992
      %996 = vset.pattern.permute.xlu0 0
      %997 = vperm.xlu0 %996, %v863
      %v998 = vpop.permute.xlu0 %997
      %1001 = vset.pattern.permute.xlu0 0
      %1002 = vperm.xlu0 %1001, %v864
      %v1003 = vpop.permute.xlu0 %1002
      %1006 = vset.pattern.permute.xlu0 0
      %1007 = vperm.xlu0 %1006, %v865
      %v1008 = vpop.permute.xlu0 %1007
      %1011 = vset.pattern.permute.xlu0 0
      %1012 = vperm.xlu0 %1011, %v866
      %v1013 = vpop.permute.xlu0 %1012
      %1016 = vset.pattern.permute.xlu0 0
      %1017 = vperm.xlu0 %1016, %v867
      %v1018 = vpop.permute.xlu0 %1017
      %1021 = vset.pattern.permute.xlu0 0
      %1022 = vperm.xlu0 %1021, %v868
      %v1023 = vpop.permute.xlu0 %1022
      %1026 = vset.pattern.permute.xlu0 0
      %1027 = vperm.xlu0 %1026, %v869
      %v1028 = vpop.permute.xlu0 %1027
      %v1062 = vunpack.c.l.b16 %v798
      %v1063 = vunpack.c.l.b16 %v799
      %v1064 = vunpack.c.l.b16 %v800
      %v1065 = vunpack.c.l.b16 %v801
      %v1066 = vunpack.c.l.b16 %v802
      %v1067 = vunpack.c.l.b16 %v803
      %v1068 = vunpack.c.l.b16 %v804
      %v1069 = vunpack.c.l.b16 %v805
      %v1070 = vunpack.c.l.b16 %v806
      %v1071 = vunpack.c.l.b16 %v807
      %v1072 = vunpack.c.l.b16 %v808
      %v1073 = vunpack.c.l.b16 %v809
      %v1074 = vunpack.c.l.b16 %v810
      %v1075 = vunpack.c.l.b16 %v811
      %v1076 = vunpack.c.l.b16 %v812
      %v1077 = vunpack.c.l.b16 %v813
      %v1078 = vunpack.c.l.b16 %v814
      %v1079 = vunpack.c.l.b16 %v815
      %v1080 = vunpack.c.l.b16 %v816
      %v1081 = vunpack.c.l.b16 %v817
      %v1082 = vunpack.c.l.b16 %v818
      %v1083 = vunpack.c.l.b16 %v819
      %v1084 = vunpack.c.l.b16 %v820
      %v1085 = vunpack.c.l.b16 %v821
      %v1086 = vunpack.c.l.b16 %v822
      %v1087 = vunpack.c.l.b16 %v823
      %v1088 = vunpack.c.l.b16 %v824
      %v1089 = vunpack.c.l.b16 %v825
      %v1090 = vunpack.c.l.b16 %v826
      %v1091 = vunpack.c.l.b16 %v827
      %v1092 = vunpack.c.l.b16 %v828
      %v1093 = vunpack.c.l.b16 %v829
      %v1094 = vpack.c.b16 %v1063, %v1062
      %v1095 = vpack.c.b16 %v1065, %v1064
      %v1096 = vpack.c.b16 %v1067, %v1066
      %v1097 = vpack.c.b16 %v1069, %v1068
      %v1098 = vpack.c.b16 %v1071, %v1070
      %v1099 = vpack.c.b16 %v1073, %v1072
      %v1100 = vpack.c.b16 %v1075, %v1074
      %v1101 = vpack.c.b16 %v1077, %v1076
      %v1102 = vpack.c.b16 %v1079, %v1078
      %v1103 = vpack.c.b16 %v1081, %v1080
      %v1104 = vpack.c.b16 %v1083, %v1082
      %v1105 = vpack.c.b16 %v1085, %v1084
      %v1106 = vpack.c.b16 %v1087, %v1086
      %v1107 = vpack.c.b16 %v1089, %v1088
      %v1108 = vpack.c.b16 %v1091, %v1090
      %v1109 = vpack.c.b16 %v1093, %v1092
      %1126 = vmatprep.subr.bf16.mxu0 0
      %1127 = vmatpush1.bf16.msra.mxu0 %v837
      %1128 = vmatprep.subr.bf16.mxu0 0
      %1129 = vmatpush1.bf16.msra.mxu0 %v836
      %1130 = vmatprep.subr.bf16.mxu0 0
      %1131 = vmatpush1.bf16.msra.mxu0 %v835
      %1132 = vmatprep.subr.bf16.mxu0 0
      %1133 = vmatpush1.bf16.msra.mxu0 %v834
      %1134 = vmatprep.subr.bf16.mxu0 0
      %1135 = vmatpush1.bf16.msra.mxu0 %v833
      %1136 = vmatprep.subr.bf16.mxu0 0
      %1137 = vmatpush1.bf16.msra.mxu0 %v832
      %1138 = vmatprep.subr.bf16.mxu0 0
      %1139 = vmatpush1.bf16.msra.mxu0 %v831
      %1140 = vmatprep.subr.bf16.mxu0 0
      %1141 = vmatpush1.bf16.msra.mxu0 %v830
      %1142 = vmatprep.subr.bf16.mxu0 0
      %1143 = vmatpush2.bf16.msra.mxu0 0
      %1144 = vmatprep.subr.bf16.mxu0 0
      %1145 = vmatpush2.bf16.msra.mxu0 0
      %1146 = vmatprep.subr.bf16.mxu0 0
      %1147 = vmatpush2.bf16.msra.mxu0 0
      %1148 = vmatprep.subr.bf16.mxu0 0
      %1149 = vmatpush2.bf16.msra.mxu0 0
      %1150 = vmatprep.subr.bf16.mxu0 0
      %1151 = vmatpush2.bf16.msra.mxu0 0
      %1152 = vmatprep.subr.bf16.mxu0 0
      %1153 = vmatpush2.bf16.msra.mxu0 0
      %1154 = vmatprep.subr.bf16.mxu0 0
      %1155 = vmatpush2.bf16.msra.mxu0 0
      %1156 = vmatprep.subr.bf16.mxu0 0
      %1157 = vmatpush2.bf16.msra.mxu0 0
      %1158 = vmatprep.mubr.bf16.mxu0 0
      %1159 = vmatmul.mubr.bf16.gmra.mxu0 %v1094
      %v1160 = vpop.f32.mrf.mxu0
      %v1161 = vadd.f32 %v873, %v1160
      %v1162 = vpop.f32.mrf.mxu0
      %v1163 = vpop.f32.mrf.mxu0
      %v1164 = vadd.f32 %v878, %v1163
      %v1165 = vpop.f32.mrf.mxu0
      %1166 = vmatprep.mubr.bf16.mxu0 0
      %1167 = vmatmul.mubr.bf16.gmra.mxu0 %v1095
      %v1168 = vpop.f32.mrf.mxu0
      %v1169 = vadd.f32 %v883, %v1168
      %v1170 = vpop.f32.mrf.mxu0
      %v1171 = vpop.f32.mrf.mxu0
      %v1172 = vadd.f32 %v888, %v1171
      %v1173 = vpop.f32.mrf.mxu0
      %1174 = vmatprep.mubr.bf16.mxu0 0
      %1175 = vmatmul.mubr.bf16.gmra.mxu0 %v1096
      %v1176 = vpop.f32.mrf.mxu0
      %v1177 = vadd.f32 %v893, %v1176
      %v1178 = vpop.f32.mrf.mxu0
      %v1179 = vpop.f32.mrf.mxu0
      %v1180 = vadd.f32 %v898, %v1179
      %v1181 = vpop.f32.mrf.mxu0
      %1182 = vmatprep.mubr.bf16.mxu0 0
      %1183 = vmatmul.mubr.bf16.gmra.mxu0 %v1097
      %v1184 = vpop.f32.mrf.mxu0
      %v1185 = vadd.f32 %v903, %v1184
      %v1186 = vpop.f32.mrf.mxu0
      %v1187 = vpop.f32.mrf.mxu0
      %v1188 = vadd.f32 %v908, %v1187
      %v1189 = vpop.f32.mrf.mxu0
      %1190 = vmatprep.mubr.bf16.mxu0 0
      %1191 = vmatmul.mubr.bf16.gmra.mxu0 %v1098
      %v1192 = vpop.f32.mrf.mxu0
      %v1193 = vadd.f32 %v913, %v1192
      %v1194 = vpop.f32.mrf.mxu0
      %v1195 = vpop.f32.mrf.mxu0
      %v1196 = vadd.f32 %v918, %v1195
      %v1197 = vpop.f32.mrf.mxu0
      %1198 = vmatprep.mubr.bf16.mxu0 0
      %1199 = vmatmul.mubr.bf16.gmra.mxu0 %v1099
      %v1200 = vpop.f32.mrf.mxu0
      %v1201 = vadd.f32 %v923, %v1200
      %v1202 = vpop.f32.mrf.mxu0
      %v1203 = vpop.f32.mrf.mxu0
      %v1204 = vadd.f32 %v928, %v1203
      %v1205 = vpop.f32.mrf.mxu0
      %1206 = vmatprep.mubr.bf16.mxu0 0
      %1207 = vmatmul.mubr.bf16.gmra.mxu0 %v1100
      %v1208 = vpop.f32.mrf.mxu0
      %v1209 = vadd.f32 %v933, %v1208
      %v1210 = vpop.f32.mrf.mxu0
      %v1211 = vpop.f32.mrf.mxu0
      %v1212 = vadd.f32 %v938, %v1211
      %v1213 = vpop.f32.mrf.mxu0
      %1214 = vmatprep.mubr.bf16.mxu0 0
      %1215 = vmatmul.mubr.bf16.gmra.mxu0 %v1101
      %v1216 = vpop.f32.mrf.mxu0
      %v1217 = vadd.f32 %v943, %v1216
      %v1218 = vpop.f32.mrf.mxu0
      %v1219 = vpop.f32.mrf.mxu0
      %v1220 = vadd.f32 %v948, %v1219
      %v1221 = vpop.f32.mrf.mxu0
      %1222 = vmatprep.mubr.bf16.mxu0 0
      %1223 = vmatmul.mubr.bf16.gmra.mxu0 %v1102
      %v1224 = vpop.f32.mrf.mxu0
      %v1225 = vadd.f32 %v953, %v1224
      %v1226 = vpop.f32.mrf.mxu0
      %v1227 = vpop.f32.mrf.mxu0
      %v1228 = vadd.f32 %v958, %v1227
      %v1229 = vpop.f32.mrf.mxu0
      %1230 = vmatprep.mubr.bf16.mxu0 0
      %1231 = vmatmul.mubr.bf16.gmra.mxu0 %v1103
      %v1232 = vpop.f32.mrf.mxu0
      %v1233 = vadd.f32 %v963, %v1232
      %v1234 = vpop.f32.mrf.mxu0
      %v1235 = vpop.f32.mrf.mxu0
      %v1236 = vadd.f32 %v968, %v1235
      %v1237 = vpop.f32.mrf.mxu0
      %1238 = vmatprep.mubr.bf16.mxu0 0
      %1239 = vmatmul.mubr.bf16.gmra.mxu0 %v1104
      %v1240 = vpop.f32.mrf.mxu0
      %v1241 = vadd.f32 %v973, %v1240
      %v1242 = vpop.f32.mrf.mxu0
      %v1243 = vpop.f32.mrf.mxu0
      %v1244 = vadd.f32 %v978, %v1243
      %v1245 = vpop.f32.mrf.mxu0
      %1246 = vmatprep.mubr.bf16.mxu0 0
      %1247 = vmatmul.mubr.bf16.gmra.mxu0 %v1105
      %v1248 = vpop.f32.mrf.mxu0
      %v1249 = vadd.f32 %v983, %v1248
      %v1250 = vpop.f32.mrf.mxu0
      %v1251 = vpop.f32.mrf.mxu0
      %v1252 = vadd.f32 %v988, %v1251
      %v1253 = vpop.f32.mrf.mxu0
      %1254 = vmatprep.mubr.bf16.mxu0 0
      %1255 = vmatmul.mubr.bf16.gmra.mxu0 %v1106
      %v1256 = vpop.f32.mrf.mxu0
      %v1257 = vadd.f32 %v993, %v1256
      %v1258 = vpop.f32.mrf.mxu0
      %v1259 = vpop.f32.mrf.mxu0
      %v1260 = vadd.f32 %v998, %v1259
      %v1261 = vpop.f32.mrf.mxu0
      %1262 = vmatprep.mubr.bf16.mxu0 0
      %1263 = vmatmul.mubr.bf16.gmra.mxu0 %v1107
      %v1264 = vpop.f32.mrf.mxu0
      %v1265 = vadd.f32 %v1003, %v1264
      %v1266 = vpop.f32.mrf.mxu0
      %v1267 = vpop.f32.mrf.mxu0
      %v1268 = vadd.f32 %v1008, %v1267
      %v1269 = vpop.f32.mrf.mxu0
      %1270 = vmatprep.mubr.bf16.mxu0 0
      %1271 = vmatmul.mubr.bf16.gmra.mxu0 %v1108
      %v1272 = vpop.f32.mrf.mxu0
      %v1273 = vadd.f32 %v1013, %v1272
      %v1274 = vpop.f32.mrf.mxu0
      %v1275 = vpop.f32.mrf.mxu0
      %v1276 = vadd.f32 %v1018, %v1275
      %v1277 = vpop.f32.mrf.mxu0
      %1278 = vmatprep.mubr.bf16.mxu0 0
      %1279 = vmatmul.mubr.bf16.gmra.mxu0 %v1109
      %v1280 = vpop.f32.mrf.mxu0
      %v1281 = vadd.f32 %v1023, %v1280
      %v1282 = vpop.f32.mrf.mxu0
      %v1283 = vpop.f32.mrf.mxu0
      %v1284 = vadd.f32 %v1028, %v1283
      %v1285 = vpop.f32.mrf.mxu0
      %1286 = vdwg.mxu0
      %v1287 = vmax.f32 %v1161, 0.0
      %v1288 = vmax.f32 %v1164, 0.0
      %v1289 = vmax.f32 %v1169, 0.0
      %v1290 = vmax.f32 %v1172, 0.0
      %v1291 = vmax.f32 %v1177, 0.0
      %v1292 = vmax.f32 %v1180, 0.0
      %v1293 = vmax.f32 %v1185, 0.0
      %v1294 = vmax.f32 %v1188, 0.0
      %v1295 = vmax.f32 %v1193, 0.0
      %v1296 = vmax.f32 %v1196, 0.0
      %v1297 = vmax.f32 %v1201, 0.0
      %v1298 = vmax.f32 %v1204, 0.0
      %v1299 = vmax.f32 %v1209, 0.0
      %v1300 = vmax.f32 %v1212, 0.0
      %v1301 = vmax.f32 %v1217, 0.0
      %v1302 = vmax.f32 %v1220, 0.0
      %v1303 = vmax.f32 %v1225, 0.0
      %v1304 = vmax.f32 %v1228, 0.0
      %v1305 = vmax.f32 %v1233, 0.0
      %v1306 = vmax.f32 %v1236, 0.0
      %v1307 = vmax.f32 %v1241, 0.0
      %v1308 = vmax.f32 %v1244, 0.0
      %v1309 = vmax.f32 %v1249, 0.0
      %v1310 = vmax.f32 %v1252, 0.0
      %v1311 = vmax.f32 %v1257, 0.0
      %v1312 = vmax.f32 %v1260, 0.0
      %v1313 = vmax.f32 %v1265, 0.0
      %v1314 = vmax.f32 %v1268, 0.0
      %v1315 = vmax.f32 %v1273, 0.0
      %v1316 = vmax.f32 %v1276, 0.0
      %v1317 = vmax.f32 %v1281, 0.0
      %v1318 = vmax.f32 %v1284, 0.0
      %1319 = vmax.xlane.f32.xlu0 %v1287
      %v1320 = vpop.xlane.xlu0 %1319
      %1321 = vmax.xlane.f32.xlu0 %v1288
      %v1322 = vpop.xlane.xlu0 %1321
      %1323 = vmax.xlane.f32.xlu0 %v1289
      %v1324 = vpop.xlane.xlu0 %1323
      %1325 = vmax.xlane.f32.xlu0 %v1290
      %v1326 = vpop.xlane.xlu0 %1325
      %1327 = vmax.xlane.f32.xlu0 %v1291
      %v1328 = vpop.xlane.xlu0 %1327
      %1329 = vmax.xlane.f32.xlu0 %v1292
      %v1330 = vpop.xlane.xlu0 %1329
      %1331 = vmax.xlane.f32.xlu0 %v1293
      %v1332 = vpop.xlane.xlu0 %1331
      %1333 = vmax.xlane.f32.xlu0 %v1294
      %v1334 = vpop.xlane.xlu0 %1333
      %1335 = vmax.xlane.f32.xlu0 %v1295
      %v1336 = vpop.xlane.xlu0 %1335
      %1337 = vmax.xlane.f32.xlu0 %v1296
      %v1338 = vpop.xlane.xlu0 %1337
      %1339 = vmax.xlane.f32.xlu0 %v1297
      %v1340 = vpop.xlane.xlu0 %1339
      %1341 = vmax.xlane.f32.xlu0 %v1298
      %v1342 = vpop.xlane.xlu0 %1341
      %1343 = vmax.xlane.f32.xlu0 %v1299
      %v1344 = vpop.xlane.xlu0 %1343
      %1345 = vmax.xlane.f32.xlu0 %v1300
      %v1346 = vpop.xlane.xlu0 %1345
      %1347 = vmax.xlane.f32.xlu0 %v1301
      %v1348 = vpop.xlane.xlu0 %1347
      %1349 = vmax.xlane.f32.xlu0 %v1302
      %v1350 = vpop.xlane.xlu0 %1349
      %1351 = vmax.xlane.f32.xlu0 %v1303
      %v1352 = vpop.xlane.xlu0 %1351
      %1353 = vmax.xlane.f32.xlu0 %v1304
      %v1354 = vpop.xlane.xlu0 %1353
      %1355 = vmax.xlane.f32.xlu0 %v1305
      %v1356 = vpop.xlane.xlu0 %1355
      %1357 = vmax.xlane.f32.xlu0 %v1306
      %v1358 = vpop.xlane.xlu0 %1357
      %1359 = vmax.xlane.f32.xlu0 %v1307
      %v1360 = vpop.xlane.xlu0 %1359
      %1361 = vmax.xlane.f32.xlu0 %v1308
      %v1362 = vpop.xlane.xlu0 %1361
      %1363 = vmax.xlane.f32.xlu0 %v1309
      %v1364 = vpop.xlane.xlu0 %1363
      %1365 = vmax.xlane.f32.xlu0 %v1310
      %v1366 = vpop.xlane.xlu0 %1365
      %1367 = vmax.xlane.f32.xlu0 %v1311
      %v1368 = vpop.xlane.xlu0 %1367
      %1369 = vmax.xlane.f32.xlu0 %v1312
      %v1370 = vpop.xlane.xlu0 %1369
      %1371 = vmax.xlane.f32.xlu0 %v1313
      %v1372 = vpop.xlane.xlu0 %1371
      %1373 = vmax.xlane.f32.xlu0 %v1314
      %v1374 = vpop.xlane.xlu0 %1373
      %1375 = vmax.xlane.f32.xlu0 %v1315
      %v1376 = vpop.xlane.xlu0 %1375
      %1377 = vmax.xlane.f32.xlu0 %v1316
      %v1378 = vpop.xlane.xlu0 %1377
      %1379 = vmax.xlane.f32.xlu0 %v1317
      %v1380 = vpop.xlane.xlu0 %1379
      %1381 = vmax.xlane.f32.xlu0 %v1318
      %v1382 = vpop.xlane.xlu0 %1381
      %v1383 = vld [vmem:[%s298] sm:$0xff]
      %v1384 = vld [vmem:[%s298 + $0x8] sm:$0xff]
      %v1385 = vld [vmem:[%s298 + $0x10] sm:$0xff]
      %v1386 = vld [vmem:[%s298 + $0x18] sm:$0xff]
      %v1387 = vld [vmem:[%s298 + $0x20] sm:$0xff]
      %v1388 = vld [vmem:[%s298 + $0x28] sm:$0xff]
      %v1389 = vld [vmem:[%s298 + $0x30] sm:$0xff]
      %v1390 = vld [vmem:[%s298 + $0x38] sm:$0xff]
      %v1391 = vld [vmem:[%s298 + $0x40] sm:$0xff]
      %v1392 = vld [vmem:[%s298 + $0x48] sm:$0xff]
      %v1393 = vld [vmem:[%s298 + $0x50] sm:$0xff]
      %v1394 = vld [vmem:[%s298 + $0x58] sm:$0xff]
      %v1395 = vld [vmem:[%s298 + $0x60] sm:$0xff]
      %v1396 = vld [vmem:[%s298 + $0x68] sm:$0xff]
      %v1397 = vld [vmem:[%s298 + $0x70] sm:$0xff]
      %v1398 = vld [vmem:[%s298 + $0x78] sm:$0xff]
      %v1399 = vld [vmem:[%s298 + $0x80] sm:$0xff]
      %v1400 = vld [vmem:[%s298 + $0x88] sm:$0xff]
      %v1401 = vld [vmem:[%s298 + $0x90] sm:$0xff]
      %v1402 = vld [vmem:[%s298 + $0x98] sm:$0xff]
      %v1403 = vld [vmem:[%s298 + $0xa0] sm:$0xff]
      %v1404 = vld [vmem:[%s298 + $0xa8] sm:$0xff]
      %v1405 = vld [vmem:[%s298 + $0xb0] sm:$0xff]
      %v1406 = vld [vmem:[%s298 + $0xb8] sm:$0xff]
      %v1407 = vld [vmem:[%s298 + $0xc0] sm:$0xff]
      %v1408 = vld [vmem:[%s298 + $0xc8] sm:$0xff]
      %v1409 = vld [vmem:[%s298 + $0xd0] sm:$0xff]
      %v1410 = vld [vmem:[%s298 + $0xd8] sm:$0xff]
      %v1411 = vld [vmem:[%s298 + $0xe0] sm:$0xff]
      %v1412 = vld [vmem:[%s298 + $0xe8] sm:$0xff]
      %v1413 = vld [vmem:[%s298 + $0xf0] sm:$0xff]
      %v1414 = vld [vmem:[%s298 + $0xf8] sm:$0xff]
      %v1415 = vmax.f32 %v1383, %v1320
      %v1416 = vmax.f32 %v1384, %v1322
      %v1417 = vmax.f32 %v1385, %v1324
      %v1418 = vmax.f32 %v1386, %v1326
      %v1419 = vmax.f32 %v1387, %v1328
      %v1420 = vmax.f32 %v1388, %v1330
      %v1421 = vmax.f32 %v1389, %v1332
      %v1422 = vmax.f32 %v1390, %v1334
      %v1423 = vmax.f32 %v1391, %v1336
      %v1424 = vmax.f32 %v1392, %v1338
      %v1425 = vmax.f32 %v1393, %v1340
      %v1426 = vmax.f32 %v1394, %v1342
      %v1427 = vmax.f32 %v1395, %v1344
      %v1428 = vmax.f32 %v1396, %v1346
      %v1429 = vmax.f32 %v1397, %v1348
      %v1430 = vmax.f32 %v1398, %v1350
      %v1431 = vmax.f32 %v1399, %v1352
      %v1432 = vmax.f32 %v1400, %v1354
      %v1433 = vmax.f32 %v1401, %v1356
      %v1434 = vmax.f32 %v1402, %v1358
      %v1435 = vmax.f32 %v1403, %v1360
      %v1436 = vmax.f32 %v1404, %v1362
      %v1437 = vmax.f32 %v1405, %v1364
      %v1438 = vmax.f32 %v1406, %v1366
      %v1439 = vmax.f32 %v1407, %v1368
      %v1440 = vmax.f32 %v1408, %v1370
      %v1441 = vmax.f32 %v1409, %v1372
      %v1442 = vmax.f32 %v1410, %v1374
      %v1443 = vmax.f32 %v1411, %v1376
      %v1444 = vmax.f32 %v1412, %v1378
      %v1445 = vmax.f32 %v1413, %v1380
      %v1446 = vmax.f32 %v1414, %v1382
      %vm1447 = vcmask 7168
      %1448 = vst.msk [vmem:[%s298] sm:$0xff] %vm1447, %v1415
      %1449 = vst.msk [vmem:[%s298 + $0x8] sm:$0xff] %vm1447, %v1416
      %1450 = vst.msk [vmem:[%s298 + $0x10] sm:$0xff] %vm1447, %v1417
      %1451 = vst.msk [vmem:[%s298 + $0x18] sm:$0xff] %vm1447, %v1418
      %1452 = vst.msk [vmem:[%s298 + $0x20] sm:$0xff] %vm1447, %v1419
      %1453 = vst.msk [vmem:[%s298 + $0x28] sm:$0xff] %vm1447, %v1420
      %1454 = vst.msk [vmem:[%s298 + $0x30] sm:$0xff] %vm1447, %v1421
      %1455 = vst.msk [vmem:[%s298 + $0x38] sm:$0xff] %vm1447, %v1422
      %1456 = vst.msk [vmem:[%s298 + $0x40] sm:$0xff] %vm1447, %v1423
      %1457 = vst.msk [vmem:[%s298 + $0x48] sm:$0xff] %vm1447, %v1424
      %1458 = vst.msk [vmem:[%s298 + $0x50] sm:$0xff] %vm1447, %v1425
      %1459 = vst.msk [vmem:[%s298 + $0x58] sm:$0xff] %vm1447, %v1426
      %1460 = vst.msk [vmem:[%s298 + $0x60] sm:$0xff] %vm1447, %v1427
      %1461 = vst.msk [vmem:[%s298 + $0x68] sm:$0xff] %vm1447, %v1428
      %1462 = vst.msk [vmem:[%s298 + $0x70] sm:$0xff] %vm1447, %v1429
      %1463 = vst.msk [vmem:[%s298 + $0x78] sm:$0xff] %vm1447, %v1430
      %1464 = vst.msk [vmem:[%s298 + $0x80] sm:$0xff] %vm1447, %v1431
      %1465 = vst.msk [vmem:[%s298 + $0x88] sm:$0xff] %vm1447, %v1432
      %1466 = vst.msk [vmem:[%s298 + $0x90] sm:$0xff] %vm1447, %v1433
      %1467 = vst.msk [vmem:[%s298 + $0x98] sm:$0xff] %vm1447, %v1434
      %1468 = vst.msk [vmem:[%s298 + $0xa0] sm:$0xff] %vm1447, %v1435
      %1469 = vst.msk [vmem:[%s298 + $0xa8] sm:$0xff] %vm1447, %v1436
      %1470 = vst.msk [vmem:[%s298 + $0xb0] sm:$0xff] %vm1447, %v1437
      %1471 = vst.msk [vmem:[%s298 + $0xb8] sm:$0xff] %vm1447, %v1438
      %1472 = vst.msk [vmem:[%s298 + $0xc0] sm:$0xff] %vm1447, %v1439
      %1473 = vst.msk [vmem:[%s298 + $0xc8] sm:$0xff] %vm1447, %v1440
      %1474 = vst.msk [vmem:[%s298 + $0xd0] sm:$0xff] %vm1447, %v1441
      %1475 = vst.msk [vmem:[%s298 + $0xd8] sm:$0xff] %vm1447, %v1442
      %1476 = vst.msk [vmem:[%s298 + $0xe0] sm:$0xff] %vm1447, %v1443
      %1477 = vst.msk [vmem:[%s298 + $0xe8] sm:$0xff] %vm1447, %v1444
      %1478 = vst.msk [vmem:[%s298 + $0xf0] sm:$0xff] %vm1447, %v1445
      %1479 = vst.msk [vmem:[%s298 + $0xf8] sm:$0xff] %vm1447, %v1446
      %p1480 = scmp.lt.s32.totalorder %s22, 1
      %s1481 = scalar_select %p1480, %s22, 1
      %s1482 = smul.addr %s1481, 32
      %s1483 = smul.addr %s1482, 8
      %s1484 = scalar_lea.vmem %s7, %s1483
      // Predicated region
      $region53: #{tpu_custom_call.1} parent=47 // pred_check
        %p1485 = pneg %p202
      $region54: #{tpu_custom_call.1} parent=47 // pred_check_branch
        %1487 = sbr.rel (%p1485) target = $region56
      $region55: #{tpu_custom_call.1} parent=47 // pred_region
        _
      $region56: #{tpu_custom_call.1} parent=47 // pred_fallthru
        _
    $region48: #{tpu_custom_call.1} parent=5 // pred_fallthru
      _
    %p1488 = scmp.le.s32.totalorder 2, %s13
    // Predicated region
    $region57: #{tpu_custom_call.1} parent=5 // pred_check
      %p1489 = pneg %p1488
    $region58: #{tpu_custom_call.1} parent=5 // pred_check_branch
      %1491 = sbr.rel (%p1489) target = $region60
    $region59: #{tpu_custom_call.1} parent=5 // pred_region
      %s1492 = ssub.s32 %s13, 2
      // Predicated region
      $region61: #{tpu_custom_call.1} parent=59 // pred_check
        %p1493 = pneg %p208
      $region62: #{tpu_custom_call.1} parent=59 // pred_check_branch
        %1495 = sbr.rel (%p1493) target = $region64
      $region63: #{tpu_custom_call.1} parent=59 // pred_region
        %p1496 = scmp.lt.s32.totalorder %s24, 1
        %s1497 = scalar_select %p1496, %s24, 1
        %s1498 = smul.addr %s1497, 32
        %s1499 = smul.addr %s1498, 8
        %s1500 = scalar_lea.vmem %s7, %s1499
      $region64: #{tpu_custom_call.1} parent=59 // pred_fallthru
        _
    $region60: #{tpu_custom_call.1} parent=5 // pred_fallthru
      _
  $region6: #{tpu_custom_call.1} parent=0 // loop_footer
    %s17 = sadd.s32 1, %s13
  $region7: #{tpu_custom_call.1} parent=0 // loop_footer_branch
    %12 = sbr.rel target = $region3
  $region8: #{tpu_custom_call.1} parent=0 // loop_exit
    _

</llo_original>
